<compile_context>
chip_gen: v7x
topology: tpu7x:2x2x1
jax: 0.10.0
libtpu: 0.0.40
codegen_flags: <defaults>
</compile_context>

<pallas_src>
import jax
import jax.numpy as jnp
from jax.experimental import pallas as pl
from jax.experimental.pallas import tpu as pltpu


# ----------------------------------------------------------------------------
# Fused kernel: embedding + all GIN layers, h resident on-chip the whole time.
# ----------------------------------------------------------------------------
def _gin_fused_kernel(feat_ref, emb_w_ref, emb_b_ref,   # (N,K) bf16, (K,D) bf16, (1,D) f32
                      a_ref,                            # (L,N,N) bf16: A + (1+eps_l) I
                      w1_ref, b1_ref,                   # (L,D,D) bf16 (BN1 folded), (L,1,D) f32
                      w2_ref, b2_ref,                   # (L,D,D) bf16 (BN_a folded), (L,1,D) f32
                      sn_ref, tn_ref,                   # (L,1,D) f32 bn_node_h scale/shift
                      o_ref):                           # (N,D) f32
    f32 = jnp.float32
    bf16 = jnp.bfloat16

    # embedding_h: Linear(in_dim -> hidden)
    h = (jnp.dot(feat_ref[...], emb_w_ref[...], preferred_element_type=f32)
         + emb_b_ref[...])

    n_layers = a_ref.shape[0]
    for l in range(n_layers):                 # static unroll (L known at trace time)
        h_in = h
        # (1+eps)*h + neighbor-sum pooling, fused into one MXU matmul:
        #   A_l = A + (1+eps_l)*I  (built host-side)
        h = jnp.dot(a_ref[l], h.astype(bf16), preferred_element_type=f32)
        # MLP: Linear -> BN -> ReLU -> Linear  (BN affines pre-folded into w/b)
        h = jnp.dot(h.astype(bf16), w1_ref[l], preferred_element_type=f32) + b1_ref[l]
        h = jnp.maximum(h, 0.0)
        h = jnp.dot(h.astype(bf16), w2_ref[l], preferred_element_type=f32) + b2_ref[l]
        # ApplyNodeFunc: BN (folded into w2/b2) -> ReLU
        h = jnp.maximum(h, 0.0)
        # GINLayer: bn_node_h -> ReLU  (cannot fold: sits after a ReLU)
        h = jnp.maximum(h * sn_ref[l] + tn_ref[l], 0.0)
        # residual (in_dim == out_dim); dropout = identity at inference
        h = h_in + h

    o_ref[...] = h


# ----------------------------------------------------------------------------
# Host-side preparation: densify graph, fold eps into A, fold BN affines,
# stack per-layer parameters.
# ----------------------------------------------------------------------------
def _prepare_inputs(feature, edge_index, params, num_nodes):
    bf16 = jnp.bfloat16
    N = num_nodes

    # densify the graph: A[dst, src] += 1  ->  (A @ h)[i] = sum_{j in N(i)} h[j]
    src, dst = edge_index[0], edge_index[1]
    A = jnp.zeros((N, N), jnp.float32).at[dst, src].add(1.0)
    eye = jnp.eye(N, dtype=jnp.float32)

    # per-layer: fold (1+eps) self-term into A, fold eval-mode BN affines into
    # the preceding Linears, and stack.
    # NOTE: bf16 A is exact for integer edge multiplicities <= 256 (unweighted
    # graphs); (1+eps) on the diagonal rounds to bf16 (exact for eps == 0).
    a_s, w1s, b1s, w2s, b2s, sns, tns = [], [], [], [], [], [], []
    for lp in params["layers"]:
        a_s.append((A + (1.0 + lp["eps"][0]) * eye).astype(bf16))
        w1s.append((lp["w1"] * lp["s1"]).astype(bf16))          # column scale
        b1s.append(lp["b1"] * lp["s1"] + lp["t1"])
        w2s.append((lp["w2"] * lp["sa"]).astype(bf16))
        b2s.append(lp["b2"] * lp["sa"] + lp["ta"])
        sns.append(lp["sn"])
        tns.append(lp["tn"])

    return {
        "A": jnp.stack(a_s),                                    # (L, N, N) bf16
        "feat": feature.astype(bf16),                           # (N, K) bf16 (no K-pad)
        "emb_w": params["emb_w"].astype(bf16),                  # (K, D) bf16
        "emb_b": params["emb_b"].astype(jnp.float32),           # (1, D) f32
        "w1": jnp.stack(w1s), "b1": jnp.stack(b1s),
        "w2": jnp.stack(w2s), "b2": jnp.stack(b2s),
        "sn": jnp.stack(sns), "tn": jnp.stack(tns),
    }


def gin_net_forward(feature, edge_index, params, num_nodes):
    p = _prepare_inputs(feature, edge_index, params, num_nodes)
    N, K = p["feat"].shape
    D = p["emb_w"].shape[1]
    L = p["w1"].shape[0]

    # whole-array, VMEM-resident, no pipelining (no degenerate grid)
    vmem_spec = pl.BlockSpec(memory_space=pltpu.MemorySpace.VMEM)

    flops = 2 * N * K * D + L * (2 * N * N * D + 2 * (2 * N * D * D))
    bytes_accessed = (
        N * K * 2 + K * D * 2 + D * 4                      # feat, emb_w, emb_b
        + L * N * N * 2                                    # A stack
        + 2 * L * D * D * 2                                # w1, w2
        + 4 * L * D * 4                                    # b1, b2, sn, tn
        + N * D * 4                                        # output
    )

    return pl.pallas_call(
        _gin_fused_kernel,
        out_shape=jax.ShapeDtypeStruct((N, D), jnp.float32),
        in_specs=[vmem_spec] * 10,
        out_specs=pl.BlockSpec(memory_space=pltpu.MemorySpace.VMEM),
        cost_estimate=pl.CostEstimate(
            flops=flops, transcendentals=0, bytes_accessed=bytes_accessed),
    )(p["feat"], p["emb_w"], p["emb_b"], p["A"],
      p["w1"], p["b1"], p["w2"], p["b2"], p["sn"], p["tn"])


# ----------------------------------------------------------------------------
# Pure-JAX references (correctness checks)
# ----------------------------------------------------------------------------
def ref_forward_f32(feature, edge_index, params, num_nodes):
    """Module semantics in full f32 / HIGHEST precision."""
    P = jax.lax.Precision.HIGHEST
    src, dst = edge_index[0], edge_index[1]
    A = jnp.zeros((num_nodes, num_nodes), jnp.float32).at[dst, src].add(1.0)
    h = jnp.dot(feature, params["emb_w"], precision=P) + params["emb_b"]
    for lp in params["layers"]:
        h_in = h
        pooled = jnp.dot(A, h, precision=P)
        h = (1.0 + lp["eps"][0]) * h + pooled
        h = jnp.maximum((jnp.dot(h, lp["w1"], precision=P) + lp["b1"]) * lp["s1"] + lp["t1"], 0.0)
        h = jnp.dot(h, lp["w2"], precision=P) + lp["b2"]
        h = jnp.maximum(h * lp["sa"] + lp["ta"], 0.0)
        h = jnp.maximum(h * lp["sn"] + lp["tn"], 0.0)
        h = h_in + h
    return h


def ref_forward_matched(p):
    """Mirror of the kernel numerics (bf16 matmul operands, folded A/BN, f32 acc)."""
    f32 = jnp.float32
    bf16 = jnp.bfloat16
    h = jnp.dot(p["feat"], p["emb_w"], preferred_element_type=f32) + p["emb_b"]
    for l in range(p["w1"].shape[0]):
        h_in = h
        h = jnp.dot(p["A"][l], h.astype(bf16), preferred_element_type=f32)
        h = jnp.maximum(jnp.dot(h.astype(bf16), p["w1"][l], preferred_element_type=f32) + p["b1"][l], 0.0)
        h = jnp.maximum(jnp.dot(h.astype(bf16), p["w2"][l], preferred_element_type=f32) + p["b2"][l], 0.0)
        h = jnp.maximum(h * p["sn"][l] + p["tn"][l], 0.0)
        h = h_in + h
    return h


# ----------------------------------------------------------------------------
# Deterministic synthetic parameter construction (module-like, unfolded)
# ----------------------------------------------------------------------------
def _bn_affine(key, dim):
    k1, k2, k3, k4 = jax.random.split(key, 4)
    gamma = 1.0 + 0.1 * jax.random.normal(k1, (1, dim), jnp.float32)
    beta = 0.1 * jax.random.normal(k2, (1, dim), jnp.float32)
    rmean = 0.1 * jax.random.normal(k3, (1, dim), jnp.float32)
    rvar = 1.0 + jnp.abs(0.1 * jax.random.normal(k4, (1, dim), jnp.float32))
    scale = gamma * jax.lax.rsqrt(rvar + 1e-5)
    shift = beta - rmean * scale
    return scale, shift


def make_params(key, in_dim, hidden, n_layers):
    keys = jax.random.split(key, 2 + n_layers)
    params = {
        # nn.Linear stores weight [out,in]; we pre-transpose to [in,out]
        "emb_w": 0.1 * jax.random.normal(keys[0], (in_dim, hidden), jnp.float32),
        "emb_b": 0.1 * jax.random.normal(keys[1], (1, hidden), jnp.float32),
        "layers": [],
    }
    for l in range(n_layers):
        ks = jax.random.split(keys[2 + l], 8)
        s1, t1 = _bn_affine(ks[4], hidden)
        sa, ta = _bn_affine(ks[5], hidden)
        sn, tn = _bn_affine(ks[6], hidden)
        params["layers"].append({
            "w1": 0.1 * jax.random.normal(ks[0], (hidden, hidden), jnp.float32),
            "b1": 0.1 * jax.random.normal(ks[1], (1, hidden), jnp.float32),
            "w2": 0.1 * jax.random.normal(ks[2], (hidden, hidden), jnp.float32),
            "b2": 0.1 * jax.random.normal(ks[3], (1, hidden), jnp.float32),
            "s1": s1, "t1": t1, "sa": sa, "ta": ta, "sn": sn, "tn": tn,
            # learn_eps parameter, initialized to 0.0 (as in the module)
            "eps": jnp.zeros((1,), jnp.float32),
        })
    return params


if __name__ == "__main__":
    N, IN_DIM, HIDDEN, E, L = 128, 16, 128, 512, 2

    key = jax.random.PRNGKey(0)
    k_feat, k_src, k_dst, k_par = jax.random.split(key, 4)

    feature = jax.random.normal(k_feat, (N, IN_DIM), jnp.float32)
    edge_index = jnp.stack([
        jax.random.randint(k_src, (E,), 0, N, dtype=jnp.int32),
        jax.random.randint(k_dst, (E,), 0, N, dtype=jnp.int32),
    ], axis=0)

    params = make_params(k_par, IN_DIM, HIDDEN, L)

    fwd = jax.jit(gin_net_forward, static_argnums=3)
    out = jax.block_until_ready(fwd(feature, edge_index, params, N))
    assert out.shape == (N, HIDDEN) and out.dtype == jnp.float32

    # (1) kernel-implementation check vs a pure-JAX reference with the SAME
    #     numerics (bf16 matmul operands, folded A / BN, f32 accumulation).
    prep = _prepare_inputs(feature, edge_index, params, N)
    ref_m = jax.block_until_ready(ref_forward_matched(prep))
    err_m = float(jnp.max(jnp.abs(out - ref_m)) / (jnp.max(jnp.abs(ref_m)) + 1e-6))
    if err_m > 2e-3:
        raise AssertionError(f"mismatch vs bf16-matched reference: rel_err={err_m}")

    # (2) end-to-end semantics check vs the full-f32 module reference
    #     (looser tolerance absorbs the deliberate bf16 matmul inputs).
    ref_f = jax.block_until_ready(ref_forward_f32(feature, edge_index, params, N))
    err_f = float(jnp.max(jnp.abs(out - ref_f)) / (jnp.max(jnp.abs(ref_f)) + 1e-6))
    if err_f > 5e-2:
        raise AssertionError(f"mismatch vs f32 reference: rel_err={err_f}")

    print("KERNEL_OK")
</pallas_src>

<mosaic_0001>
module attributes {stable_mosaic.version = 11 : i64} {
  func.func private @main(%arg0: i32) attributes {dimension_semantics = [#tpu.dimension_semantics<core_parallel>], iteration_bounds = array<i64: 2>, tpu.core_type = #tpu.core_type<sc_scalar_subcore>, window_params = []} {
    return
  }
}

module attributes {stable_mosaic.version = 11 : i64} {
  func.func private @main(%arg0: i32) attributes {dimension_semantics = [#tpu.dimension_semantics<core_parallel>], iteration_bounds = array<i64: 2>, tpu.core_type = #tpu.core_type<sc_scalar_subcore>, window_params = []} {
    return
  }
}

module attributes {stable_mosaic.version = 11 : i64} {
  func.func @_gin_fused_kernel(%arg0: memref<128x16xbf16, #tpu.memory_space<vmem>>, %arg1: memref<16x128xbf16, #tpu.memory_space<vmem>>, %arg2: memref<1x128xf32, #tpu.memory_space<vmem>>, %arg3: memref<2x128x128xbf16, #tpu.memory_space<vmem>>, %arg4: memref<2x128x128xbf16, #tpu.memory_space<vmem>>, %arg5: memref<2x1x128xf32, #tpu.memory_space<vmem>>, %arg6: memref<2x128x128xbf16, #tpu.memory_space<vmem>>, %arg7: memref<2x1x128xf32, #tpu.memory_space<vmem>>, %arg8: memref<2x1x128xf32, #tpu.memory_space<vmem>>, %arg9: memref<2x1x128xf32, #tpu.memory_space<vmem>>, %arg10: memref<128x128xf32, #tpu.memory_space<vmem>>) attributes {dimension_semantics = [], scalar_prefetch = 0 : i64, scratch_operands = 0 : i64, tpu.core_type = #tpu.core_type<tc>} {
    %c0 = arith.constant 0 : index
    %c0_0 = arith.constant 0 : index
    %0 = vector.load %arg0[%c0, %c0_0] : memref<128x16xbf16, #tpu.memory_space<vmem>>, vector<128x16xbf16>
    %c0_1 = arith.constant 0 : index
    %c0_2 = arith.constant 0 : index
    %1 = vector.load %arg1[%c0_1, %c0_2] : memref<16x128xbf16, #tpu.memory_space<vmem>>, vector<16x128xbf16>
    %cst = arith.constant dense<0.000000e+00> : vector<128x128xf32>
    %2 = tpu.matmul %0, %1, %cst {dimension_numbers = #tpu.dot_dimension_numbers<[1], [0], [0], [1], [0, 0, 1, 1], [], []>} : vector<128x16xbf16>, vector<16x128xbf16>, vector<128x128xf32> -> vector<128x128xf32>
    %c0_3 = arith.constant 0 : index
    %c0_4 = arith.constant 0 : index
    %3 = vector.load %arg2[%c0_3, %c0_4] : memref<1x128xf32, #tpu.memory_space<vmem>>, vector<1x128xf32>
    %4 = vector.broadcast %3 : vector<1x128xf32> to vector<128x128xf32>
    %5 = arith.addf %2, %4 : vector<128x128xf32>
    %c0_5 = arith.constant 0 : index
    %c0_6 = arith.constant 0 : index
    %c0_7 = arith.constant 0 : index
    %6 = vector.load %arg3[%c0_5, %c0_6, %c0_7] : memref<2x128x128xbf16, #tpu.memory_space<vmem>>, vector<1x128x128xbf16>
    %7 = vector.shape_cast %6 : vector<1x128x128xbf16> to vector<128x128xbf16>
    %8 = arith.truncf %5 : vector<128x128xf32> to vector<128x128xbf16>
    %cst_8 = arith.constant dense<0.000000e+00> : vector<128x128xf32>
    %9 = tpu.matmul %7, %8, %cst_8 {dimension_numbers = #tpu.dot_dimension_numbers<[1], [0], [0], [1], [0, 0, 1, 1], [], []>} : vector<128x128xbf16>, vector<128x128xbf16>, vector<128x128xf32> -> vector<128x128xf32>
    %10 = arith.truncf %9 : vector<128x128xf32> to vector<128x128xbf16>
    %c0_9 = arith.constant 0 : index
    %c0_10 = arith.constant 0 : index
    %c0_11 = arith.constant 0 : index
    %11 = vector.load %arg4[%c0_9, %c0_10, %c0_11] : memref<2x128x128xbf16, #tpu.memory_space<vmem>>, vector<1x128x128xbf16>
    %12 = vector.shape_cast %11 : vector<1x128x128xbf16> to vector<128x128xbf16>
    %cst_12 = arith.constant dense<0.000000e+00> : vector<128x128xf32>
    %13 = tpu.matmul %10, %12, %cst_12 {dimension_numbers = #tpu.dot_dimension_numbers<[1], [0], [0], [1], [0, 0, 1, 1], [], []>} : vector<128x128xbf16>, vector<128x128xbf16>, vector<128x128xf32> -> vector<128x128xf32>
    %c0_13 = arith.constant 0 : index
    %c0_14 = arith.constant 0 : index
    %c0_15 = arith.constant 0 : index
    %14 = vector.load %arg5[%c0_13, %c0_14, %c0_15] : memref<2x1x128xf32, #tpu.memory_space<vmem>>, vector<1x1x128xf32>
    %15 = vector.shape_cast %14 : vector<1x1x128xf32> to vector<1x128xf32>
    %16 = vector.broadcast %15 : vector<1x128xf32> to vector<128x128xf32>
    %17 = arith.addf %13, %16 : vector<128x128xf32>
    %cst_16 = arith.constant 0.000000e+00 : f32
    %18 = vector.broadcast %cst_16 : f32 to vector<128x128xf32>
    %19 = arith.maximumf %17, %18 : vector<128x128xf32>
    %20 = arith.truncf %19 : vector<128x128xf32> to vector<128x128xbf16>
    %c0_17 = arith.constant 0 : index
    %c0_18 = arith.constant 0 : index
    %c0_19 = arith.constant 0 : index
    %21 = vector.load %arg6[%c0_17, %c0_18, %c0_19] : memref<2x128x128xbf16, #tpu.memory_space<vmem>>, vector<1x128x128xbf16>
    %22 = vector.shape_cast %21 : vector<1x128x128xbf16> to vector<128x128xbf16>
    %cst_20 = arith.constant dense<0.000000e+00> : vector<128x128xf32>
    %23 = tpu.matmul %20, %22, %cst_20 {dimension_numbers = #tpu.dot_dimension_numbers<[1], [0], [0], [1], [0, 0, 1, 1], [], []>} : vector<128x128xbf16>, vector<128x128xbf16>, vector<128x128xf32> -> vector<128x128xf32>
    %c0_21 = arith.constant 0 : index
    %c0_22 = arith.constant 0 : index
    %c0_23 = arith.constant 0 : index
    %24 = vector.load %arg7[%c0_21, %c0_22, %c0_23] : memref<2x1x128xf32, #tpu.memory_space<vmem>>, vector<1x1x128xf32>
    %25 = vector.shape_cast %24 : vector<1x1x128xf32> to vector<1x128xf32>
    %26 = vector.broadcast %25 : vector<1x128xf32> to vector<128x128xf32>
    %27 = arith.addf %23, %26 : vector<128x128xf32>
    %cst_24 = arith.constant 0.000000e+00 : f32
    %28 = vector.broadcast %cst_24 : f32 to vector<128x128xf32>
    %29 = arith.maximumf %27, %28 : vector<128x128xf32>
    %c0_25 = arith.constant 0 : index
    %c0_26 = arith.constant 0 : index
    %c0_27 = arith.constant 0 : index
    %30 = vector.load %arg8[%c0_25, %c0_26, %c0_27] : memref<2x1x128xf32, #tpu.memory_space<vmem>>, vector<1x1x128xf32>
    %31 = vector.shape_cast %30 : vector<1x1x128xf32> to vector<1x128xf32>
    %32 = vector.broadcast %31 : vector<1x128xf32> to vector<128x128xf32>
    %33 = arith.mulf %29, %32 : vector<128x128xf32>
    %c0_28 = arith.constant 0 : index
    %c0_29 = arith.constant 0 : index
    %c0_30 = arith.constant 0 : index
    %34 = vector.load %arg9[%c0_28, %c0_29, %c0_30] : memref<2x1x128xf32, #tpu.memory_space<vmem>>, vector<1x1x128xf32>
    %35 = vector.shape_cast %34 : vector<1x1x128xf32> to vector<1x128xf32>
    %36 = vector.broadcast %35 : vector<1x128xf32> to vector<128x128xf32>
    %37 = arith.addf %33, %36 : vector<128x128xf32>
    %cst_31 = arith.constant 0.000000e+00 : f32
    %38 = vector.broadcast %cst_31 : f32 to vector<128x128xf32>
    %39 = arith.maximumf %37, %38 : vector<128x128xf32>
    %40 = arith.addf %5, %39 : vector<128x128xf32>
    %c1 = arith.constant 1 : index
    %c0_32 = arith.constant 0 : index
    %c0_33 = arith.constant 0 : index
    %41 = vector.load %arg3[%c1, %c0_32, %c0_33] : memref<2x128x128xbf16, #tpu.memory_space<vmem>>, vector<1x128x128xbf16>
    %42 = vector.shape_cast %41 : vector<1x128x128xbf16> to vector<128x128xbf16>
    %43 = arith.truncf %40 : vector<128x128xf32> to vector<128x128xbf16>
    %cst_34 = arith.constant dense<0.000000e+00> : vector<128x128xf32>
    %44 = tpu.matmul %42, %43, %cst_34 {dimension_numbers = #tpu.dot_dimension_numbers<[1], [0], [0], [1], [0, 0, 1, 1], [], []>} : vector<128x128xbf16>, vector<128x128xbf16>, vector<128x128xf32> -> vector<128x128xf32>
    %45 = arith.truncf %44 : vector<128x128xf32> to vector<128x128xbf16>
    %c1_35 = arith.constant 1 : index
    %c0_36 = arith.constant 0 : index
    %c0_37 = arith.constant 0 : index
    %46 = vector.load %arg4[%c1_35, %c0_36, %c0_37] : memref<2x128x128xbf16, #tpu.memory_space<vmem>>, vector<1x128x128xbf16>
    %47 = vector.shape_cast %46 : vector<1x128x128xbf16> to vector<128x128xbf16>
    %cst_38 = arith.constant dense<0.000000e+00> : vector<128x128xf32>
    %48 = tpu.matmul %45, %47, %cst_38 {dimension_numbers = #tpu.dot_dimension_numbers<[1], [0], [0], [1], [0, 0, 1, 1], [], []>} : vector<128x128xbf16>, vector<128x128xbf16>, vector<128x128xf32> -> vector<128x128xf32>
    %c1_39 = arith.constant 1 : index
    %c0_40 = arith.constant 0 : index
    %c0_41 = arith.constant 0 : index
    %49 = vector.load %arg5[%c1_39, %c0_40, %c0_41] : memref<2x1x128xf32, #tpu.memory_space<vmem>>, vector<1x1x128xf32>
    %50 = vector.shape_cast %49 : vector<1x1x128xf32> to vector<1x128xf32>
    %51 = vector.broadcast %50 : vector<1x128xf32> to vector<128x128xf32>
    %52 = arith.addf %48, %51 : vector<128x128xf32>
    %cst_42 = arith.constant 0.000000e+00 : f32
    %53 = vector.broadcast %cst_42 : f32 to vector<128x128xf32>
    %54 = arith.maximumf %52, %53 : vector<128x128xf32>
    %55 = arith.truncf %54 : vector<128x128xf32> to vector<128x128xbf16>
    %c1_43 = arith.constant 1 : index
    %c0_44 = arith.constant 0 : index
    %c0_45 = arith.constant 0 : index
    %56 = vector.load %arg6[%c1_43, %c0_44, %c0_45] : memref<2x128x128xbf16, #tpu.memory_space<vmem>>, vector<1x128x128xbf16>
    %57 = vector.shape_cast %56 : vector<1x128x128xbf16> to vector<128x128xbf16>
    %cst_46 = arith.constant dense<0.000000e+00> : vector<128x128xf32>
    %58 = tpu.matmul %55, %57, %cst_46 {dimension_numbers = #tpu.dot_dimension_numbers<[1], [0], [0], [1], [0, 0, 1, 1], [], []>} : vector<128x128xbf16>, vector<128x128xbf16>, vector<128x128xf32> -> vector<128x128xf32>
    %c1_47 = arith.constant 1 : index
    %c0_48 = arith.constant 0 : index
    %c0_49 = arith.constant 0 : index
    %59 = vector.load %arg7[%c1_47, %c0_48, %c0_49] : memref<2x1x128xf32, #tpu.memory_space<vmem>>, vector<1x1x128xf32>
    %60 = vector.shape_cast %59 : vector<1x1x128xf32> to vector<1x128xf32>
    %61 = vector.broadcast %60 : vector<1x128xf32> to vector<128x128xf32>
    %62 = arith.addf %58, %61 : vector<128x128xf32>
    %cst_50 = arith.constant 0.000000e+00 : f32
    %63 = vector.broadcast %cst_50 : f32 to vector<128x128xf32>
    %64 = arith.maximumf %62, %63 : vector<128x128xf32>
    %c1_51 = arith.constant 1 : index
    %c0_52 = arith.constant 0 : index
    %c0_53 = arith.constant 0 : index
    %65 = vector.load %arg8[%c1_51, %c0_52, %c0_53] : memref<2x1x128xf32, #tpu.memory_space<vmem>>, vector<1x1x128xf32>
    %66 = vector.shape_cast %65 : vector<1x1x128xf32> to vector<1x128xf32>
    %67 = vector.broadcast %66 : vector<1x128xf32> to vector<128x128xf32>
    %68 = arith.mulf %64, %67 : vector<128x128xf32>
    %c1_54 = arith.constant 1 : index
    %c0_55 = arith.constant 0 : index
    %c0_56 = arith.constant 0 : index
    %69 = vector.load %arg9[%c1_54, %c0_55, %c0_56] : memref<2x1x128xf32, #tpu.memory_space<vmem>>, vector<1x1x128xf32>
    %70 = vector.shape_cast %69 : vector<1x1x128xf32> to vector<1x128xf32>
    %71 = vector.broadcast %70 : vector<1x128xf32> to vector<128x128xf32>
    %72 = arith.addf %68, %71 : vector<128x128xf32>
    %cst_57 = arith.constant 0.000000e+00 : f32
    %73 = vector.broadcast %cst_57 : f32 to vector<128x128xf32>
    %74 = arith.maximumf %72, %73 : vector<128x128xf32>
    %75 = arith.addf %40, %74 : vector<128x128xf32>
    %c0_58 = arith.constant 0 : index
    %c0_59 = arith.constant 0 : index
    %76 = vector.load %arg10[%c0_58, %c0_59] : memref<128x128xf32, #tpu.memory_space<vmem>>, vector<128x128xf32>
    tpu.vector_store %arg10[%c0_58, %c0_59], %75 {strides = array<i32>} : memref<128x128xf32, #tpu.memory_space<vmem>>, vector<128x128xf32>,
    return
  }
}

</mosaic_0001>

<llo_original>
// kernel: gin_net_forward.1
$region0: #{gin_net_forward.1}
  #allocation0 [shape = 'u32[]', space=smem, size = 0x4, offset = 0x4, fixed_abs, tag = 'smem constant byte address 0x4 - core index']
  #allocation1 [shape = 'u32[144,128]{1,0:T(1,128)}', space=vmem, size = 0x12000, scoped, tag = 'internal scratch']
  %s0 = inlined_call_operand.vmem [shape: bf16[128,16], index: 0, kind: input, shape index: {}]
  %s1 = inlined_call_operand.vmem [shape: bf16[16,128], index: 1, kind: input, shape index: {}]
  %s2 = inlined_call_operand.vmem [shape: f32[1,128], index: 2, kind: input, shape index: {}]
  %s3 = inlined_call_operand.vmem [shape: bf16[2,128,128], index: 3, kind: input, shape index: {}]
  %s4 = inlined_call_operand.vmem [shape: bf16[2,128,128], index: 4, kind: input, shape index: {}]
  %s5 = inlined_call_operand.vmem [shape: f32[2,1,128], index: 5, kind: input, shape index: {}]
  %s6 = inlined_call_operand.vmem [shape: bf16[2,128,128], index: 6, kind: input, shape index: {}]
  %s7 = inlined_call_operand.vmem [shape: f32[2,1,128], index: 7, kind: input, shape index: {}]
  %s8 = inlined_call_operand.vmem [shape: f32[2,1,128], index: 8, kind: input, shape index: {}]
  %s9 = inlined_call_operand.vmem [shape: f32[2,1,128], index: 9, kind: input, shape index: {}]
  %s10 = inlined_call_operand.hbm [shape: f32[128,128], index: 10, kind: output, shape index: {}]
  %s11 = sld [smem:[#allocation0]]
  $region50: #{gin_net_forward.1} parent=0
    _
  %s13 = ssub.s32 1, %s11
  %s14 = scalar_select 0, %s13, %s11
  $region1: #{gin_net_forward.1} parent=0
    #allocation2 [shape = 'u8[65536]{0}', space=vmem, size = 0x10000, scoped, tag = 'output window, operand 0, single buffered']
    #allocation3 [shape = 's32[1]{0}', space=sflag, size = 0x4, scoped, tag = 'scoped memory for gin_net_forward.1']
    %15 = vsyncpa [#allocation3], 0
    // Predicated region
    $region2: #{gin_net_forward.1} parent=1 // pred_check
      _
    $region3: #{gin_net_forward.1} parent=1 // pred_check_branch
      %17 = sbr.rel (0) target = $region5
    $region4: #{gin_net_forward.1} parent=1 // pred_region
      _
    $region5: #{gin_net_forward.1} parent=1 // pred_fallthru
      _
    // Predicated region
    $region6: #{gin_net_forward.1} parent=1 // pred_check
      _
    $region7: #{gin_net_forward.1} parent=1 // pred_check_branch
      %19 = sbr.rel (0) target = $region9
    $region8: #{gin_net_forward.1} parent=1 // pred_region
      _
    $region9: #{gin_net_forward.1} parent=1 // pred_fallthru
      _
    // Predicated region
    $region10: #{gin_net_forward.1} parent=1 // pred_check
      _
    $region11: #{gin_net_forward.1} parent=1 // pred_check_branch
      %21 = sbr.rel (0) target = $region13
    $region12: #{gin_net_forward.1} parent=1 // pred_region
      _
    $region13: #{gin_net_forward.1} parent=1 // pred_fallthru
      _
    // Predicated region
    $region14: #{gin_net_forward.1} parent=1 // pred_check
      _
    $region15: #{gin_net_forward.1} parent=1 // pred_check_branch
      %23 = sbr.rel (0) target = $region17
    $region16: #{gin_net_forward.1} parent=1 // pred_region
      _
    $region17: #{gin_net_forward.1} parent=1 // pred_fallthru
      _
    // Predicated region
    $region18: #{gin_net_forward.1} parent=1 // pred_check
      _
    $region19: #{gin_net_forward.1} parent=1 // pred_check_branch
      %25 = sbr.rel (0) target = $region21
    $region20: #{gin_net_forward.1} parent=1 // pred_region
      _
    $region21: #{gin_net_forward.1} parent=1 // pred_fallthru
      _
    // Predicated region
    $region22: #{gin_net_forward.1} parent=1 // pred_check
      _
    $region23: #{gin_net_forward.1} parent=1 // pred_check_branch
      %27 = sbr.rel (0) target = $region25
    $region24: #{gin_net_forward.1} parent=1 // pred_region
      _
    $region25: #{gin_net_forward.1} parent=1 // pred_fallthru
      _
    // Predicated region
    $region26: #{gin_net_forward.1} parent=1 // pred_check
      _
    $region27: #{gin_net_forward.1} parent=1 // pred_check_branch
      %29 = sbr.rel (0) target = $region29
    $region28: #{gin_net_forward.1} parent=1 // pred_region
      _
    $region29: #{gin_net_forward.1} parent=1 // pred_fallthru
      _
    // Predicated region
    $region30: #{gin_net_forward.1} parent=1 // pred_check
      _
    $region31: #{gin_net_forward.1} parent=1 // pred_check_branch
      %31 = sbr.rel (0) target = $region33
    $region32: #{gin_net_forward.1} parent=1 // pred_region
      _
    $region33: #{gin_net_forward.1} parent=1 // pred_fallthru
      _
    // Predicated region
    $region34: #{gin_net_forward.1} parent=1 // pred_check
      _
    $region35: #{gin_net_forward.1} parent=1 // pred_check_branch
      %33 = sbr.rel (0) target = $region37
    $region36: #{gin_net_forward.1} parent=1 // pred_region
      _
    $region37: #{gin_net_forward.1} parent=1 // pred_fallthru
      _
    // Predicated region
    $region38: #{gin_net_forward.1} parent=1 // pred_check
      _
    $region39: #{gin_net_forward.1} parent=1 // pred_check_branch
      %35 = sbr.rel (0) target = $region41
    $region40: #{gin_net_forward.1} parent=1 // pred_region
      _
    $region41: #{gin_net_forward.1} parent=1 // pred_fallthru
      _
    %v37 = vld [vmem:[%s0] sm:$0xf]
    %v38 = vld [vmem:[%s0 + $0x4] sm:$0xf]
    %v39 = vld [vmem:[%s0 + $0x8] sm:$0xf]
    %v40 = vld [vmem:[%s0 + $0xc] sm:$0xf]
    %v41 = vld [vmem:[%s0 + $0x10] sm:$0xf]
    %v42 = vld [vmem:[%s0 + $0x14] sm:$0xf]
    %v43 = vld [vmem:[%s0 + $0x18] sm:$0xf]
    %v44 = vld [vmem:[%s0 + $0x1c] sm:$0xf]
    %v45 = vld [vmem:[%s0 + $0x20] sm:$0xf]
    %v46 = vld [vmem:[%s0 + $0x24] sm:$0xf]
    %v47 = vld [vmem:[%s0 + $0x28] sm:$0xf]
    %v48 = vld [vmem:[%s0 + $0x2c] sm:$0xf]
    %v49 = vld [vmem:[%s0 + $0x30] sm:$0xf]
    %v50 = vld [vmem:[%s0 + $0x34] sm:$0xf]
    %v51 = vld [vmem:[%s0 + $0x38] sm:$0xf]
    %v52 = vld [vmem:[%s0 + $0x3c] sm:$0xf]
    %v53 = vld [vmem:[%s1] sm:$0xf]
    %v54 = vld [vmem:[%s1 + $0x4] sm:$0xf]
    %v55 = vld [vmem:[%s2] sm:$0x1]
    %v57 = vlaneseq
    %v58 = vshrl.u32 %v57, 7
    %v59 = vsub.s32 0, %v58
    %v60 = vrot.slane %v55, %v59
    %v78 = vunpack.c.l.b16 %v37
    %v79 = vunpack.c.l.b16 %v38
    %v80 = vunpack.c.l.b16 %v39
    %v81 = vunpack.c.l.b16 %v40
    %v82 = vunpack.c.l.b16 %v41
    %v83 = vunpack.c.l.b16 %v42
    %v84 = vunpack.c.l.b16 %v43
    %v85 = vunpack.c.l.b16 %v44
    %v86 = vunpack.c.l.b16 %v45
    %v87 = vunpack.c.l.b16 %v46
    %v88 = vunpack.c.l.b16 %v47
    %v89 = vunpack.c.l.b16 %v48
    %v90 = vunpack.c.l.b16 %v49
    %v91 = vunpack.c.l.b16 %v50
    %v92 = vunpack.c.l.b16 %v51
    %v93 = vunpack.c.l.b16 %v52
    %v94 = vpack.c.b16 %v79, %v78
    %v95 = vpack.c.b16 %v81, %v80
    %v96 = vpack.c.b16 %v83, %v82
    %v97 = vpack.c.b16 %v85, %v84
    %v98 = vpack.c.b16 %v87, %v86
    %v99 = vpack.c.b16 %v89, %v88
    %v100 = vpack.c.b16 %v91, %v90
    %v101 = vpack.c.b16 %v93, %v92
    %v104 = vunpack.c.l.b16 %v53
    %v105 = vunpack.c.l.b16 %v54
    %v106 = vpack.c.b16 %v105, %v104
    %vm108 = vcmask 130048
    %v110 = vsel %vm108, %v94, 0
    %v113 = vsel %vm108, %v95, 0
    %v116 = vsel %vm108, %v96, 0
    %v119 = vsel %vm108, %v97, 0
    %v122 = vsel %vm108, %v98, 0
    %v125 = vsel %vm108, %v99, 0
    %v128 = vsel %vm108, %v100, 0
    %v131 = vsel %vm108, %v101, 0
    %133 = vmatprep.subr.bf16.mxu0 0
    %134 = vmatpush1.bf16.msra.mxu0 %v106
    %135 = vmatprep.subr.bf16.mxu0 0
    %136 = vmatpush1.bf16.msra.mxu0 0
    %137 = vmatprep.subr.bf16.mxu0 0
    %138 = vmatpush1.bf16.msra.mxu0 0
    %139 = vmatprep.subr.bf16.mxu0 0
    %140 = vmatpush1.bf16.msra.mxu0 0
    %141 = vmatprep.subr.bf16.mxu0 0
    %142 = vmatpush1.bf16.msra.mxu0 0
    %143 = vmatprep.subr.bf16.mxu0 0
    %144 = vmatpush1.bf16.msra.mxu0 0
    %145 = vmatprep.subr.bf16.mxu0 0
    %146 = vmatpush1.bf16.msra.mxu0 0
    %147 = vmatprep.subr.bf16.mxu0 0
    %148 = vmatpush1.bf16.msra.mxu0 0
    %149 = vmatprep.subr.bf16.mxu0 0
    %150 = vmatpush1.bf16.msra.mxu0 0
    %151 = vmatprep.subr.bf16.mxu0 0
    %152 = vmatpush1.bf16.msra.mxu0 0
    %153 = vmatprep.subr.bf16.mxu0 0
    %154 = vmatpush1.bf16.msra.mxu0 0
    %155 = vmatprep.subr.bf16.mxu0 0
    %156 = vmatpush1.bf16.msra.mxu0 0
    %157 = vmatprep.subr.bf16.mxu0 0
    %158 = vmatpush1.bf16.msra.mxu0 0
    %159 = vmatprep.subr.bf16.mxu0 0
    %160 = vmatpush1.bf16.msra.mxu0 0
    %161 = vmatprep.subr.bf16.mxu0 0
    %162 = vmatpush1.bf16.msra.mxu0 0
    %163 = vmatprep.subr.bf16.mxu0 0
    %164 = vmatpush1.bf16.msra.mxu0 0
    %165 = vmatprep.mubr.bf16.mxu0 0
    %166 = vmatmul.mubr.bf16.gmra.mrb[0].mxu0 %v110
    %v167 = vpop.f32.mrb[0].mxu0
    %v168 = vadd.f32 %v60, %v167
    %v169 = vpop.f32.mrb[0].mxu0
    %v170 = vpop.f32.mrb[0].mxu0
    %v171 = vadd.f32 %v60, %v170
    %v172 = vpop.f32.mrb[0].mxu0
    %173 = vmatprep.mubr.bf16.mxu0 0
    %174 = vmatmul.mubr.bf16.gmra.mrb[0].mxu0 %v113
    %v175 = vpop.f32.mrb[0].mxu0
    %v176 = vadd.f32 %v60, %v175
    %v177 = vpop.f32.mrb[0].mxu0
    %v178 = vpop.f32.mrb[0].mxu0
    %v179 = vadd.f32 %v60, %v178
    %v180 = vpop.f32.mrb[0].mxu0
    %181 = vmatprep.mubr.bf16.mxu0 0
    %182 = vmatmul.mubr.bf16.gmra.mrb[0].mxu0 %v116
    %v183 = vpop.f32.mrb[0].mxu0
    %v184 = vadd.f32 %v60, %v183
    %v185 = vpop.f32.mrb[0].mxu0
    %v186 = vpop.f32.mrb[0].mxu0
    %v187 = vadd.f32 %v60, %v186
    %v188 = vpop.f32.mrb[0].mxu0
    %189 = vmatprep.mubr.bf16.mxu0 0
    %190 = vmatmul.mubr.bf16.gmra.mrb[0].mxu0 %v119
    %v191 = vpop.f32.mrb[0].mxu0
    %v192 = vadd.f32 %v60, %v191
    %v193 = vpop.f32.mrb[0].mxu0
    %v194 = vpop.f32.mrb[0].mxu0
    %v195 = vadd.f32 %v60, %v194
    %v196 = vpop.f32.mrb[0].mxu0
    %197 = vmatprep.mubr.bf16.mxu0 0
    %198 = vmatmul.mubr.bf16.gmra.mrb[0].mxu0 %v122
    %v199 = vpop.f32.mrb[0].mxu0
    %v200 = vadd.f32 %v60, %v199
    %v201 = vpop.f32.mrb[0].mxu0
    %v202 = vpop.f32.mrb[0].mxu0
    %v203 = vadd.f32 %v60, %v202
    %v204 = vpop.f32.mrb[0].mxu0
    %205 = vmatprep.mubr.bf16.mxu0 0
    %206 = vmatmul.mubr.bf16.gmra.mrb[0].mxu0 %v125
    %v207 = vpop.f32.mrb[0].mxu0
    %v208 = vadd.f32 %v60, %v207
    %v209 = vpop.f32.mrb[0].mxu0
    %v210 = vpop.f32.mrb[0].mxu0
    %v211 = vadd.f32 %v60, %v210
    %v212 = vpop.f32.mrb[0].mxu0
    %213 = vmatprep.mubr.bf16.mxu0 0
    %214 = vmatmul.mubr.bf16.gmra.mrb[0].mxu0 %v128
    %v215 = vpop.f32.mrb[0].mxu0
    %v216 = vadd.f32 %v60, %v215
    %v217 = vpop.f32.mrb[0].mxu0
    %v218 = vpop.f32.mrb[0].mxu0
    %v219 = vadd.f32 %v60, %v218
    %v220 = vpop.f32.mrb[0].mxu0
    %221 = vmatprep.mubr.bf16.mxu0 0
    %222 = vmatmul.mubr.bf16.gmra.mrb[0].mxu0 %v131
    %v223 = vpop.f32.mrb[0].mxu0
    %v224 = vadd.f32 %v60, %v223
    %v225 = vpop.f32.mrb[0].mxu0
    %v226 = vpop.f32.mrb[0].mxu0
    %v227 = vadd.f32 %v60, %v226
    %v228 = vpop.f32.mrb[0].mxu0
    %229 = vdwg.mxu0
    %v230 = vld [vmem:[%s3] sm:$0xf]
    %v231 = vld [vmem:[%s3 + $0x4] sm:$0xf]
    %v232 = vld [vmem:[%s3 + $0x8] sm:$0xf]
    %v233 = vld [vmem:[%s3 + $0xc] sm:$0xf]
    %v234 = vld [vmem:[%s3 + $0x10] sm:$0xf]
    %v235 = vld [vmem:[%s3 + $0x14] sm:$0xf]
    %v236 = vld [vmem:[%s3 + $0x18] sm:$0xf]
    %v237 = vld [vmem:[%s3 + $0x1c] sm:$0xf]
    %v238 = vld [vmem:[%s3 + $0x20] sm:$0xf]
    %v239 = vld [vmem:[%s3 + $0x24] sm:$0xf]
    %v240 = vld [vmem:[%s3 + $0x28] sm:$0xf]
    %v241 = vld [vmem:[%s3 + $0x2c] sm:$0xf]
    %v242 = vld [vmem:[%s3 + $0x30] sm:$0xf]
    %v243 = vld [vmem:[%s3 + $0x34] sm:$0xf]
    %v244 = vld [vmem:[%s3 + $0x38] sm:$0xf]
    %v245 = vld [vmem:[%s3 + $0x3c] sm:$0xf]
    %v246 = vpack.c.bf16 %v171, %v168
    %v247 = vpack.c.bf16 %v179, %v176
    %v248 = vpack.c.bf16 %v187, %v184
    %v249 = vpack.c.bf16 %v195, %v192
    %v250 = vpack.c.bf16 %v203, %v200
    %v251 = vpack.c.bf16 %v211, %v208
    %v252 = vpack.c.bf16 %v219, %v216
    %v253 = vpack.c.bf16 %v227, %v224
    %v270 = vunpack.c.l.b16 %v230
    %v271 = vunpack.c.l.b16 %v231
    %v272 = vunpack.c.l.b16 %v232
    %v273 = vunpack.c.l.b16 %v233
    %v274 = vunpack.c.l.b16 %v234
    %v275 = vunpack.c.l.b16 %v235
    %v276 = vunpack.c.l.b16 %v236
    %v277 = vunpack.c.l.b16 %v237
    %v278 = vunpack.c.l.b16 %v238
    %v279 = vunpack.c.l.b16 %v239
    %v280 = vunpack.c.l.b16 %v240
    %v281 = vunpack.c.l.b16 %v241
    %v282 = vunpack.c.l.b16 %v242
    %v283 = vunpack.c.l.b16 %v243
    %v284 = vunpack.c.l.b16 %v244
    %v285 = vunpack.c.l.b16 %v245
    %v286 = vpack.c.b16 %v271, %v270
    %v287 = vpack.c.b16 %v273, %v272
    %v288 = vpack.c.b16 %v275, %v274
    %v289 = vpack.c.b16 %v277, %v276
    %v290 = vpack.c.b16 %v279, %v278
    %v291 = vpack.c.b16 %v281, %v280
    %v292 = vpack.c.b16 %v283, %v282
    %v293 = vpack.c.b16 %v285, %v284
    %302 = vmatprep.subr.bf16.mxu0 0
    %303 = vmatpush1.bf16.msra.mxu0 %v246
    %304 = vmatprep.subr.bf16.mxu0 0
    %305 = vmatpush1.bf16.msra.mxu0 %v247
    %306 = vmatprep.subr.bf16.mxu0 0
    %307 = vmatpush1.bf16.msra.mxu0 %v248
    %308 = vmatprep.subr.bf16.mxu0 0
    %309 = vmatpush1.bf16.msra.mxu0 %v249
    %310 = vmatprep.subr.bf16.mxu0 0
    %311 = vmatpush1.bf16.msra.mxu0 %v250
    %312 = vmatprep.subr.bf16.mxu0 0
    %313 = vmatpush1.bf16.msra.mxu0 %v251
    %314 = vmatprep.subr.bf16.mxu0 0
    %315 = vmatpush1.bf16.msra.mxu0 %v252
    %316 = vmatprep.subr.bf16.mxu0 0
    %317 = vmatpush1.bf16.msra.mxu0 %v253
    %318 = vmatprep.subr.bf16.mxu0 0
    %319 = vmatpush1.bf16.msra.mxu0 0
    %320 = vmatprep.subr.bf16.mxu0 0
    %321 = vmatpush1.bf16.msra.mxu0 0
    %322 = vmatprep.subr.bf16.mxu0 0
    %323 = vmatpush1.bf16.msra.mxu0 0
    %324 = vmatprep.subr.bf16.mxu0 0
    %325 = vmatpush1.bf16.msra.mxu0 0
    %326 = vmatprep.subr.bf16.mxu0 0
    %327 = vmatpush1.bf16.msra.mxu0 0
    %328 = vmatprep.subr.bf16.mxu0 0
    %329 = vmatpush1.bf16.msra.mxu0 0
    %330 = vmatprep.subr.bf16.mxu0 0
    %331 = vmatpush1.bf16.msra.mxu0 0
    %332 = vmatprep.subr.bf16.mxu0 0
    %333 = vmatpush1.bf16.msra.mxu0 0
    %334 = vmatprep.mubr.bf16.mxu0 0
    %335 = vmatmul.mubr.bf16.gmra.mrb[0].mxu0 %v286
    %v336 = vpop.f32.mrb[0].mxu0
    %v337 = vadd.f32 0.0, %v336
    %v338 = vpop.f32.mrb[0].mxu0
    %v339 = vpop.f32.mrb[0].mxu0
    %v340 = vadd.f32 0.0, %v339
    %v341 = vpop.f32.mrb[0].mxu0
    %342 = vmatprep.mubr.bf16.mxu0 0
    %343 = vmatmul.mubr.bf16.gmra.mrb[0].mxu0 %v287
    %v344 = vpop.f32.mrb[0].mxu0
    %v345 = vadd.f32 0.0, %v344
    %v346 = vpop.f32.mrb[0].mxu0
    %v347 = vpop.f32.mrb[0].mxu0
    %v348 = vadd.f32 0.0, %v347
    %v349 = vpop.f32.mrb[0].mxu0
    %350 = vmatprep.mubr.bf16.mxu0 0
    %351 = vmatmul.mubr.bf16.gmra.mrb[0].mxu0 %v288
    %v352 = vpop.f32.mrb[0].mxu0
    %v353 = vadd.f32 0.0, %v352
    %v354 = vpop.f32.mrb[0].mxu0
    %v355 = vpop.f32.mrb[0].mxu0
    %v356 = vadd.f32 0.0, %v355
    %v357 = vpop.f32.mrb[0].mxu0
    %358 = vmatprep.mubr.bf16.mxu0 0
    %359 = vmatmul.mubr.bf16.gmra.mrb[0].mxu0 %v289
    %v360 = vpop.f32.mrb[0].mxu0
    %v361 = vadd.f32 0.0, %v360
    %v362 = vpop.f32.mrb[0].mxu0
    %v363 = vpop.f32.mrb[0].mxu0
    %v364 = vadd.f32 0.0, %v363
    %v365 = vpop.f32.mrb[0].mxu0
    %366 = vmatprep.mubr.bf16.mxu0 0
    %367 = vmatmul.mubr.bf16.gmra.mrb[0].mxu0 %v290
    %v368 = vpop.f32.mrb[0].mxu0
    %v369 = vadd.f32 0.0, %v368
    %v370 = vpop.f32.mrb[0].mxu0
    %v371 = vpop.f32.mrb[0].mxu0
    %v372 = vadd.f32 0.0, %v371
    %v373 = vpop.f32.mrb[0].mxu0
    %374 = vmatprep.mubr.bf16.mxu0 0
    %375 = vmatmul.mubr.bf16.gmra.mrb[0].mxu0 %v291
    %v376 = vpop.f32.mrb[0].mxu0
    %v377 = vadd.f32 0.0, %v376
    %v378 = vpop.f32.mrb[0].mxu0
    %v379 = vpop.f32.mrb[0].mxu0
    %v380 = vadd.f32 0.0, %v379
    %v381 = vpop.f32.mrb[0].mxu0
    %382 = vmatprep.mubr.bf16.mxu0 0
    %383 = vmatmul.mubr.bf16.gmra.mrb[0].mxu0 %v292
    %v384 = vpop.f32.mrb[0].mxu0
    %v385 = vadd.f32 0.0, %v384
    %v386 = vpop.f32.mrb[0].mxu0
    %v387 = vpop.f32.mrb[0].mxu0
    %v388 = vadd.f32 0.0, %v387
    %v389 = vpop.f32.mrb[0].mxu0
    %390 = vmatprep.mubr.bf16.mxu0 0
    %391 = vmatmul.mubr.bf16.gmra.mrb[0].mxu0 %v293
    %v392 = vpop.f32.mrb[0].mxu0
    %v393 = vadd.f32 0.0, %v392
    %v394 = vpop.f32.mrb[0].mxu0
    %v395 = vpop.f32.mrb[0].mxu0
    %v396 = vadd.f32 0.0, %v395
    %v397 = vpop.f32.mrb[0].mxu0
    %398 = vdwg.mxu0
    %v399 = vpack.c.bf16 %v340, %v337
    %v400 = vpack.c.bf16 %v348, %v345
    %v401 = vpack.c.bf16 %v356, %v353
    %v402 = vpack.c.bf16 %v364, %v361
    %v403 = vpack.c.bf16 %v372, %v369
    %v404 = vpack.c.bf16 %v380, %v377
    %v405 = vpack.c.bf16 %v388, %v385
    %v406 = vpack.c.bf16 %v396, %v393
    %v407 = vld [vmem:[%s4] sm:$0xf]
    %v408 = vld [vmem:[%s4 + $0x4] sm:$0xf]
    %v409 = vld [vmem:[%s4 + $0x8] sm:$0xf]
    %v410 = vld [vmem:[%s4 + $0xc] sm:$0xf]
    %v411 = vld [vmem:[%s4 + $0x10] sm:$0xf]
    %v412 = vld [vmem:[%s4 + $0x14] sm:$0xf]
    %v413 = vld [vmem:[%s4 + $0x18] sm:$0xf]
    %v414 = vld [vmem:[%s4 + $0x1c] sm:$0xf]
    %v415 = vld [vmem:[%s4 + $0x20] sm:$0xf]
    %v416 = vld [vmem:[%s4 + $0x24] sm:$0xf]
    %v417 = vld [vmem:[%s4 + $0x28] sm:$0xf]
    %v418 = vld [vmem:[%s4 + $0x2c] sm:$0xf]
    %v419 = vld [vmem:[%s4 + $0x30] sm:$0xf]
    %v420 = vld [vmem:[%s4 + $0x34] sm:$0xf]
    %v421 = vld [vmem:[%s4 + $0x38] sm:$0xf]
    %v422 = vld [vmem:[%s4 + $0x3c] sm:$0xf]
    %v423 = vld [vmem:[%s5] sm:$0x1]
    %v425 = vlaneseq
    %v426 = vshrl.u32 %v425, 7
    %v427 = vsub.s32 0, %v426
    %v428 = vrot.slane %v423, %v427
    %v446 = vunpack.c.l.b16 %v407
    %v447 = vunpack.c.l.b16 %v408
    %v448 = vunpack.c.l.b16 %v409
    %v449 = vunpack.c.l.b16 %v410
    %v450 = vunpack.c.l.b16 %v411
    %v451 = vunpack.c.l.b16 %v412
    %v452 = vunpack.c.l.b16 %v413
    %v453 = vunpack.c.l.b16 %v414
    %v454 = vunpack.c.l.b16 %v415
    %v455 = vunpack.c.l.b16 %v416
    %v456 = vunpack.c.l.b16 %v417
    %v457 = vunpack.c.l.b16 %v418
    %v458 = vunpack.c.l.b16 %v419
    %v459 = vunpack.c.l.b16 %v420
    %v460 = vunpack.c.l.b16 %v421
    %v461 = vunpack.c.l.b16 %v422
    %v462 = vpack.c.b16 %v447, %v446
    %v463 = vpack.c.b16 %v449, %v448
    %v464 = vpack.c.b16 %v451, %v450
    %v465 = vpack.c.b16 %v453, %v452
    %v466 = vpack.c.b16 %v455, %v454
    %v467 = vpack.c.b16 %v457, %v456
    %v468 = vpack.c.b16 %v459, %v458
    %v469 = vpack.c.b16 %v461, %v460
    %478 = vmatprep.subr.bf16.mxu0 0
    %479 = vmatpush1.bf16.msra.mxu0 %v462
    %480 = vmatprep.subr.bf16.mxu0 0
    %481 = vmatpush1.bf16.msra.mxu0 %v463
    %482 = vmatprep.subr.bf16.mxu0 0
    %483 = vmatpush1.bf16.msra.mxu0 %v464
    %484 = vmatprep.subr.bf16.mxu0 0
    %485 = vmatpush1.bf16.msra.mxu0 %v465
    %486 = vmatprep.subr.bf16.mxu0 0
    %487 = vmatpush1.bf16.msra.mxu0 %v466
    %488 = vmatprep.subr.bf16.mxu0 0
    %489 = vmatpush1.bf16.msra.mxu0 %v467
    %490 = vmatprep.subr.bf16.mxu0 0
    %491 = vmatpush1.bf16.msra.mxu0 %v468
    %492 = vmatprep.subr.bf16.mxu0 0
    %493 = vmatpush1.bf16.msra.mxu0 %v469
    %494 = vmatprep.subr.bf16.mxu0 0
    %495 = vmatpush1.bf16.msra.mxu0 0
    %496 = vmatprep.subr.bf16.mxu0 0
    %497 = vmatpush1.bf16.msra.mxu0 0
    %498 = vmatprep.subr.bf16.mxu0 0
    %499 = vmatpush1.bf16.msra.mxu0 0
    %500 = vmatprep.subr.bf16.mxu0 0
    %501 = vmatpush1.bf16.msra.mxu0 0
    %502 = vmatprep.subr.bf16.mxu0 0
    %503 = vmatpush1.bf16.msra.mxu0 0
    %504 = vmatprep.subr.bf16.mxu0 0
    %505 = vmatpush1.bf16.msra.mxu0 0
    %506 = vmatprep.subr.bf16.mxu0 0
    %507 = vmatpush1.bf16.msra.mxu0 0
    %508 = vmatprep.subr.bf16.mxu0 0
    %509 = vmatpush1.bf16.msra.mxu0 0
    %510 = vmatprep.mubr.bf16.mxu0 0
    %511 = vmatmul.mubr.bf16.gmra.mrb[0].mxu0 %v399
    %v512 = vpop.f32.mrb[0].mxu0
    %v513 = vadd.f32 %v428, %v512
    %v514 = vpop.f32.mrb[0].mxu0
    %v515 = vpop.f32.mrb[0].mxu0
    %v516 = vadd.f32 %v428, %v515
    %v517 = vpop.f32.mrb[0].mxu0
    %518 = vmatprep.mubr.bf16.mxu0 0
    %519 = vmatmul.mubr.bf16.gmra.mrb[0].mxu0 %v400
    %v520 = vpop.f32.mrb[0].mxu0
    %v521 = vadd.f32 %v428, %v520
    %v522 = vpop.f32.mrb[0].mxu0
    %v523 = vpop.f32.mrb[0].mxu0
    %v524 = vadd.f32 %v428, %v523
    %v525 = vpop.f32.mrb[0].mxu0
    %526 = vmatprep.mubr.bf16.mxu0 0
    %527 = vmatmul.mubr.bf16.gmra.mrb[0].mxu0 %v401
    %v528 = vpop.f32.mrb[0].mxu0
    %v529 = vadd.f32 %v428, %v528
    %v530 = vpop.f32.mrb[0].mxu0
    %v531 = vpop.f32.mrb[0].mxu0
    %v532 = vadd.f32 %v428, %v531
    %v533 = vpop.f32.mrb[0].mxu0
    %534 = vmatprep.mubr.bf16.mxu0 0
    %535 = vmatmul.mubr.bf16.gmra.mrb[0].mxu0 %v402
    %v536 = vpop.f32.mrb[0].mxu0
    %v537 = vadd.f32 %v428, %v536
    %v538 = vpop.f32.mrb[0].mxu0
    %v539 = vpop.f32.mrb[0].mxu0
    %v540 = vadd.f32 %v428, %v539
    %v541 = vpop.f32.mrb[0].mxu0
    %542 = vmatprep.mubr.bf16.mxu0 0
    %543 = vmatmul.mubr.bf16.gmra.mrb[0].mxu0 %v403
    %v544 = vpop.f32.mrb[0].mxu0
    %v545 = vadd.f32 %v428, %v544
    %v546 = vpop.f32.mrb[0].mxu0
    %v547 = vpop.f32.mrb[0].mxu0
    %v548 = vadd.f32 %v428, %v547
    %v549 = vpop.f32.mrb[0].mxu0
    %550 = vmatprep.mubr.bf16.mxu0 0
    %551 = vmatmul.mubr.bf16.gmra.mrb[0].mxu0 %v404
    %v552 = vpop.f32.mrb[0].mxu0
    %v553 = vadd.f32 %v428, %v552
    %v554 = vpop.f32.mrb[0].mxu0
    %v555 = vpop.f32.mrb[0].mxu0
    %v556 = vadd.f32 %v428, %v555
    %v557 = vpop.f32.mrb[0].mxu0
    %558 = vmatprep.mubr.bf16.mxu0 0
    %559 = vmatmul.mubr.bf16.gmra.mrb[0].mxu0 %v405
    %v560 = vpop.f32.mrb[0].mxu0
    %v561 = vadd.f32 %v428, %v560
    %v562 = vpop.f32.mrb[0].mxu0
    %v563 = vpop.f32.mrb[0].mxu0
    %v564 = vadd.f32 %v428, %v563
    %v565 = vpop.f32.mrb[0].mxu0
    %566 = vmatprep.mubr.bf16.mxu0 0
    %567 = vmatmul.mubr.bf16.gmra.mrb[0].mxu0 %v406
    %v568 = vpop.f32.mrb[0].mxu0
    %v569 = vadd.f32 %v428, %v568
    %v570 = vpop.f32.mrb[0].mxu0
    %v571 = vpop.f32.mrb[0].mxu0
    %v572 = vadd.f32 %v428, %v571
    %v573 = vpop.f32.mrb[0].mxu0
    %574 = vdwg.mxu0
    %v575 = vmax.f32 %v513, 0.0
    %v576 = vmax.f32 %v516, 0.0
    %v577 = vmax.f32 %v521, 0.0
    %v578 = vmax.f32 %v524, 0.0
    %v579 = vmax.f32 %v529, 0.0
    %v580 = vmax.f32 %v532, 0.0
    %v581 = vmax.f32 %v537, 0.0
    %v582 = vmax.f32 %v540, 0.0
    %v583 = vmax.f32 %v545, 0.0
    %v584 = vmax.f32 %v548, 0.0
    %v585 = vmax.f32 %v553, 0.0
    %v586 = vmax.f32 %v556, 0.0
    %v587 = vmax.f32 %v561, 0.0
    %v588 = vmax.f32 %v564, 0.0
    %v589 = vmax.f32 %v569, 0.0
    %v590 = vmax.f32 %v572, 0.0
    %v591 = vpack.c.bf16 %v576, %v575
    %v592 = vpack.c.bf16 %v578, %v577
    %v593 = vpack.c.bf16 %v580, %v579
    %v594 = vpack.c.bf16 %v582, %v581
    %v595 = vpack.c.bf16 %v584, %v583
    %v596 = vpack.c.bf16 %v586, %v585
    %v597 = vpack.c.bf16 %v588, %v587
    %v598 = vpack.c.bf16 %v590, %v589
    %v599 = vld [vmem:[%s6] sm:$0xf]
    %v600 = vld [vmem:[%s6 + $0x4] sm:$0xf]
    %v601 = vld [vmem:[%s6 + $0x8] sm:$0xf]
    %v602 = vld [vmem:[%s6 + $0xc] sm:$0xf]
    %v603 = vld [vmem:[%s6 + $0x10] sm:$0xf]
    %v604 = vld [vmem:[%s6 + $0x14] sm:$0xf]
    %v605 = vld [vmem:[%s6 + $0x18] sm:$0xf]
    %v606 = vld [vmem:[%s6 + $0x1c] sm:$0xf]
    %v607 = vld [vmem:[%s6 + $0x20] sm:$0xf]
    %v608 = vld [vmem:[%s6 + $0x24] sm:$0xf]
    %v609 = vld [vmem:[%s6 + $0x28] sm:$0xf]
    %v610 = vld [vmem:[%s6 + $0x2c] sm:$0xf]
    %v611 = vld [vmem:[%s6 + $0x30] sm:$0xf]
    %v612 = vld [vmem:[%s6 + $0x34] sm:$0xf]
    %v613 = vld [vmem:[%s6 + $0x38] sm:$0xf]
    %v614 = vld [vmem:[%s6 + $0x3c] sm:$0xf]
    %v615 = vld [vmem:[%s7] sm:$0x1]
    %v617 = vlaneseq
    %v618 = vshrl.u32 %v617, 7
    %v619 = vsub.s32 0, %v618
    %v620 = vrot.slane %v615, %v619
    %v638 = vunpack.c.l.b16 %v599
    %v639 = vunpack.c.l.b16 %v600
    %v640 = vunpack.c.l.b16 %v601
    %v641 = vunpack.c.l.b16 %v602
    %v642 = vunpack.c.l.b16 %v603
    %v643 = vunpack.c.l.b16 %v604
    %v644 = vunpack.c.l.b16 %v605
    %v645 = vunpack.c.l.b16 %v606
    %v646 = vunpack.c.l.b16 %v607
    %v647 = vunpack.c.l.b16 %v608
    %v648 = vunpack.c.l.b16 %v609
    %v649 = vunpack.c.l.b16 %v610
    %v650 = vunpack.c.l.b16 %v611
    %v651 = vunpack.c.l.b16 %v612
    %v652 = vunpack.c.l.b16 %v613
    %v653 = vunpack.c.l.b16 %v614
    %v654 = vpack.c.b16 %v639, %v638
    %v655 = vpack.c.b16 %v641, %v640
    %v656 = vpack.c.b16 %v643, %v642
    %v657 = vpack.c.b16 %v645, %v644
    %v658 = vpack.c.b16 %v647, %v646
    %v659 = vpack.c.b16 %v649, %v648
    %v660 = vpack.c.b16 %v651, %v650
    %v661 = vpack.c.b16 %v653, %v652
    %670 = vmatprep.subr.bf16.mxu0 0
    %671 = vmatpush1.bf16.msra.mxu0 %v654
    %672 = vmatprep.subr.bf16.mxu0 0
    %673 = vmatpush1.bf16.msra.mxu0 %v655
    %674 = vmatprep.subr.bf16.mxu0 0
    %675 = vmatpush1.bf16.msra.mxu0 %v656
    %676 = vmatprep.subr.bf16.mxu0 0
    %677 = vmatpush1.bf16.msra.mxu0 %v657
    %678 = vmatprep.subr.bf16.mxu0 0
    %679 = vmatpush1.bf16.msra.mxu0 %v658
    %680 = vmatprep.subr.bf16.mxu0 0
    %681 = vmatpush1.bf16.msra.mxu0 %v659
    %682 = vmatprep.subr.bf16.mxu0 0
    %683 = vmatpush1.bf16.msra.mxu0 %v660
    %684 = vmatprep.subr.bf16.mxu0 0
    %685 = vmatpush1.bf16.msra.mxu0 %v661
    %686 = vmatprep.subr.bf16.mxu0 0
    %687 = vmatpush1.bf16.msra.mxu0 0
    %688 = vmatprep.subr.bf16.mxu0 0
    %689 = vmatpush1.bf16.msra.mxu0 0
    %690 = vmatprep.subr.bf16.mxu0 0
    %691 = vmatpush1.bf16.msra.mxu0 0
    %692 = vmatprep.subr.bf16.mxu0 0
    %693 = vmatpush1.bf16.msra.mxu0 0
    %694 = vmatprep.subr.bf16.mxu0 0
    %695 = vmatpush1.bf16.msra.mxu0 0
    %696 = vmatprep.subr.bf16.mxu0 0
    %697 = vmatpush1.bf16.msra.mxu0 0
    %698 = vmatprep.subr.bf16.mxu0 0
    %699 = vmatpush1.bf16.msra.mxu0 0
    %700 = vmatprep.subr.bf16.mxu0 0
    %701 = vmatpush1.bf16.msra.mxu0 0
    %702 = vmatprep.mubr.bf16.mxu0 0
    %703 = vmatmul.mubr.bf16.gmra.mrb[0].mxu0 %v591
    %v704 = vpop.f32.mrb[0].mxu0
    %v705 = vadd.f32 %v620, %v704
    %v706 = vpop.f32.mrb[0].mxu0
    %v707 = vpop.f32.mrb[0].mxu0
    %v708 = vadd.f32 %v620, %v707
    %v709 = vpop.f32.mrb[0].mxu0
    %710 = vmatprep.mubr.bf16.mxu0 0
    %711 = vmatmul.mubr.bf16.gmra.mrb[0].mxu0 %v592
    %v712 = vpop.f32.mrb[0].mxu0
    %v713 = vadd.f32 %v620, %v712
    %v714 = vpop.f32.mrb[0].mxu0
    %v715 = vpop.f32.mrb[0].mxu0
    %v716 = vadd.f32 %v620, %v715
    %v717 = vpop.f32.mrb[0].mxu0
    %718 = vmatprep.mubr.bf16.mxu0 0
    %719 = vmatmul.mubr.bf16.gmra.mrb[0].mxu0 %v593
    %v720 = vpop.f32.mrb[0].mxu0
    %v721 = vadd.f32 %v620, %v720
    %v722 = vpop.f32.mrb[0].mxu0
    %v723 = vpop.f32.mrb[0].mxu0
    %v724 = vadd.f32 %v620, %v723
    %v725 = vpop.f32.mrb[0].mxu0
    %726 = vmatprep.mubr.bf16.mxu0 0
    %727 = vmatmul.mubr.bf16.gmra.mrb[0].mxu0 %v594
    %v728 = vpop.f32.mrb[0].mxu0
    %v729 = vadd.f32 %v620, %v728
    %v730 = vpop.f32.mrb[0].mxu0
    %v731 = vpop.f32.mrb[0].mxu0
    %v732 = vadd.f32 %v620, %v731
    %v733 = vpop.f32.mrb[0].mxu0
    %734 = vmatprep.mubr.bf16.mxu0 0
    %735 = vmatmul.mubr.bf16.gmra.mrb[0].mxu0 %v595
    %v736 = vpop.f32.mrb[0].mxu0
    %v737 = vadd.f32 %v620, %v736
    %v738 = vpop.f32.mrb[0].mxu0
    %v739 = vpop.f32.mrb[0].mxu0
    %v740 = vadd.f32 %v620, %v739
    %v741 = vpop.f32.mrb[0].mxu0
    %742 = vmatprep.mubr.bf16.mxu0 0
    %743 = vmatmul.mubr.bf16.gmra.mrb[0].mxu0 %v596
    %v744 = vpop.f32.mrb[0].mxu0
    %v745 = vadd.f32 %v620, %v744
    %v746 = vpop.f32.mrb[0].mxu0
    %v747 = vpop.f32.mrb[0].mxu0
    %v748 = vadd.f32 %v620, %v747
    %v749 = vpop.f32.mrb[0].mxu0
    %750 = vmatprep.mubr.bf16.mxu0 0
    %751 = vmatmul.mubr.bf16.gmra.mrb[0].mxu0 %v597
    %v752 = vpop.f32.mrb[0].mxu0
    %v753 = vadd.f32 %v620, %v752
    %v754 = vpop.f32.mrb[0].mxu0
    %v755 = vpop.f32.mrb[0].mxu0
    %v756 = vadd.f32 %v620, %v755
    %v757 = vpop.f32.mrb[0].mxu0
    %758 = vmatprep.mubr.bf16.mxu0 0
    %759 = vmatmul.mubr.bf16.gmra.mrb[0].mxu0 %v598
    %v760 = vpop.f32.mrb[0].mxu0
    %v761 = vadd.f32 %v620, %v760
    %v762 = vpop.f32.mrb[0].mxu0
    %v763 = vpop.f32.mrb[0].mxu0
    %v764 = vadd.f32 %v620, %v763
    %v765 = vpop.f32.mrb[0].mxu0
    %766 = vdwg.mxu0
    %v767 = vmax.f32 %v705, 0.0
    %v768 = vmax.f32 %v708, 0.0
    %v769 = vmax.f32 %v713, 0.0
    %v770 = vmax.f32 %v716, 0.0
    %v771 = vmax.f32 %v721, 0.0
    %v772 = vmax.f32 %v724, 0.0
    %v773 = vmax.f32 %v729, 0.0
    %v774 = vmax.f32 %v732, 0.0
    %v775 = vmax.f32 %v737, 0.0
    %v776 = vmax.f32 %v740, 0.0
    %v777 = vmax.f32 %v745, 0.0
    %v778 = vmax.f32 %v748, 0.0
    %v779 = vmax.f32 %v753, 0.0
    %v780 = vmax.f32 %v756, 0.0
    %v781 = vmax.f32 %v761, 0.0
    %v782 = vmax.f32 %v764, 0.0
    %v783 = vld [vmem:[%s8] sm:$0x1]
    %v785 = vlaneseq
    %v786 = vshrl.u32 %v785, 7
    %v787 = vsub.s32 0, %v786
    %v788 = vrot.slane %v783, %v787
    %v790 = vmul.f32 %v767, %v788
    %v791 = vmul.f32 %v768, %v788
    %v792 = vmul.f32 %v769, %v788
    %v793 = vmul.f32 %v770, %v788
    %v794 = vmul.f32 %v771, %v788
    %v795 = vmul.f32 %v772, %v788
    %v796 = vmul.f32 %v773, %v788
    %v797 = vmul.f32 %v774, %v788
    %v798 = vmul.f32 %v775, %v788
    %v799 = vmul.f32 %v776, %v788
    %v800 = vmul.f32 %v777, %v788
    %v801 = vmul.f32 %v778, %v788
    %v802 = vmul.f32 %v779, %v788
    %v803 = vmul.f32 %v780, %v788
    %v804 = vmul.f32 %v781, %v788
    %v805 = vmul.f32 %v782, %v788
    %v806 = vld [vmem:[%s9] sm:$0x1]
    %v808 = vlaneseq
    %v809 = vshrl.u32 %v808, 7
    %v810 = vsub.s32 0, %v809
    %v811 = vrot.slane %v806, %v810
    %v813 = vadd.f32 %v790, %v811
    %v814 = vadd.f32 %v791, %v811
    %v815 = vadd.f32 %v792, %v811
    %v816 = vadd.f32 %v793, %v811
    %v817 = vadd.f32 %v794, %v811
    %v818 = vadd.f32 %v795, %v811
    %v819 = vadd.f32 %v796, %v811
    %v820 = vadd.f32 %v797, %v811
    %v821 = vadd.f32 %v798, %v811
    %v822 = vadd.f32 %v799, %v811
    %v823 = vadd.f32 %v800, %v811
    %v824 = vadd.f32 %v801, %v811
    %v825 = vadd.f32 %v802, %v811
    %v826 = vadd.f32 %v803, %v811
    %v827 = vadd.f32 %v804, %v811
    %v828 = vadd.f32 %v805, %v811
    %v829 = vmax.f32 %v813, 0.0
    %v830 = vmax.f32 %v814, 0.0
    %v831 = vmax.f32 %v815, 0.0
    %v832 = vmax.f32 %v816, 0.0
    %v833 = vmax.f32 %v817, 0.0
    %v834 = vmax.f32 %v818, 0.0
    %v835 = vmax.f32 %v819, 0.0
    %v836 = vmax.f32 %v820, 0.0
    %v837 = vmax.f32 %v821, 0.0
    %v838 = vmax.f32 %v822, 0.0
    %v839 = vmax.f32 %v823, 0.0
    %v840 = vmax.f32 %v824, 0.0
    %v841 = vmax.f32 %v825, 0.0
    %v842 = vmax.f32 %v826, 0.0
    %v843 = vmax.f32 %v827, 0.0
    %v844 = vmax.f32 %v828, 0.0
    %v845 = vadd.f32 %v168, %v829
    %v846 = vadd.f32 %v171, %v830
    %v847 = vadd.f32 %v176, %v831
    %v848 = vadd.f32 %v179, %v832
    %v849 = vadd.f32 %v184, %v833
    %v850 = vadd.f32 %v187, %v834
    %v851 = vadd.f32 %v192, %v835
    %v852 = vadd.f32 %v195, %v836
    %v853 = vadd.f32 %v200, %v837
    %v854 = vadd.f32 %v203, %v838
    %v855 = vadd.f32 %v208, %v839
    %v856 = vadd.f32 %v211, %v840
    %v857 = vadd.f32 %v216, %v841
    %v858 = vadd.f32 %v219, %v842
    %v859 = vadd.f32 %v224, %v843
    %v860 = vadd.f32 %v227, %v844
    %s861 = scalar_lea.vmem %s3, 64
    %v862 = vld [vmem:[%s861] sm:$0xf]
    %v863 = vld [vmem:[%s861 + $0x4] sm:$0xf]
    %v864 = vld [vmem:[%s861 + $0x8] sm:$0xf]
    %v865 = vld [vmem:[%s861 + $0xc] sm:$0xf]
    %v866 = vld [vmem:[%s861 + $0x10] sm:$0xf]
    %v867 = vld [vmem:[%s861 + $0x14] sm:$0xf]
    %v868 = vld [vmem:[%s861 + $0x18] sm:$0xf]
    %v869 = vld [vmem:[%s861 + $0x1c] sm:$0xf]
    %v870 = vld [vmem:[%s861 + $0x20] sm:$0xf]
    %v871 = vld [vmem:[%s861 + $0x24] sm:$0xf]
    %v872 = vld [vmem:[%s861 + $0x28] sm:$0xf]
    %v873 = vld [vmem:[%s861 + $0x2c] sm:$0xf]
    %v874 = vld [vmem:[%s861 + $0x30] sm:$0xf]
    %v875 = vld [vmem:[%s861 + $0x34] sm:$0xf]
    %v876 = vld [vmem:[%s861 + $0x38] sm:$0xf]
    %v877 = vld [vmem:[%s861 + $0x3c] sm:$0xf]
    %v878 = vpack.c.bf16 %v846, %v845
    %v879 = vpack.c.bf16 %v848, %v847
    %v880 = vpack.c.bf16 %v850, %v849
    %v881 = vpack.c.bf16 %v852, %v851
    %v882 = vpack.c.bf16 %v854, %v853
    %v883 = vpack.c.bf16 %v856, %v855
    %v884 = vpack.c.bf16 %v858, %v857
    %v885 = vpack.c.bf16 %v860, %v859
    %v902 = vunpack.c.l.b16 %v862
    %v903 = vunpack.c.l.b16 %v863
    %v904 = vunpack.c.l.b16 %v864
    %v905 = vunpack.c.l.b16 %v865
    %v906 = vunpack.c.l.b16 %v866
    %v907 = vunpack.c.l.b16 %v867
    %v908 = vunpack.c.l.b16 %v868
    %v909 = vunpack.c.l.b16 %v869
    %v910 = vunpack.c.l.b16 %v870
    %v911 = vunpack.c.l.b16 %v871
    %v912 = vunpack.c.l.b16 %v872
    %v913 = vunpack.c.l.b16 %v873
    %v914 = vunpack.c.l.b16 %v874
    %v915 = vunpack.c.l.b16 %v875
    %v916 = vunpack.c.l.b16 %v876
    %v917 = vunpack.c.l.b16 %v877
    %v918 = vpack.c.b16 %v903, %v902
    %v919 = vpack.c.b16 %v905, %v904
    %v920 = vpack.c.b16 %v907, %v906
    %v921 = vpack.c.b16 %v909, %v908
    %v922 = vpack.c.b16 %v911, %v910
    %v923 = vpack.c.b16 %v913, %v912
    %v924 = vpack.c.b16 %v915, %v914
    %v925 = vpack.c.b16 %v917, %v916
    %934 = vmatprep.subr.bf16.mxu0 0
    %935 = vmatpush1.bf16.msra.mxu0 %v878
    %936 = vmatprep.subr.bf16.mxu0 0
    %937 = vmatpush1.bf16.msra.mxu0 %v879
    %938 = vmatprep.subr.bf16.mxu0 0
    %939 = vmatpush1.bf16.msra.mxu0 %v880
    %940 = vmatprep.subr.bf16.mxu0 0
    %941 = vmatpush1.bf16.msra.mxu0 %v881
    %942 = vmatprep.subr.bf16.mxu0 0
    %943 = vmatpush1.bf16.msra.mxu0 %v882
    %944 = vmatprep.subr.bf16.mxu0 0
    %945 = vmatpush1.bf16.msra.mxu0 %v883
    %946 = vmatprep.subr.bf16.mxu0 0
    %947 = vmatpush1.bf16.msra.mxu0 %v884
    %948 = vmatprep.subr.bf16.mxu0 0
    %949 = vmatpush1.bf16.msra.mxu0 %v885
    %950 = vmatprep.subr.bf16.mxu0 0
    %951 = vmatpush1.bf16.msra.mxu0 0
    %952 = vmatprep.subr.bf16.mxu0 0
    %953 = vmatpush1.bf16.msra.mxu0 0
    %954 = vmatprep.subr.bf16.mxu0 0
    %955 = vmatpush1.bf16.msra.mxu0 0
    %956 = vmatprep.subr.bf16.mxu0 0
    %957 = vmatpush1.bf16.msra.mxu0 0
    %958 = vmatprep.subr.bf16.mxu0 0
    %959 = vmatpush1.bf16.msra.mxu0 0
    %960 = vmatprep.subr.bf16.mxu0 0
    %961 = vmatpush1.bf16.msra.mxu0 0
    %962 = vmatprep.subr.bf16.mxu0 0
    %963 = vmatpush1.bf16.msra.mxu0 0
    %964 = vmatprep.subr.bf16.mxu0 0
    %965 = vmatpush1.bf16.msra.mxu0 0
    %966 = vmatprep.mubr.bf16.mxu0 0
    %967 = vmatmul.mubr.bf16.gmra.mrb[0].mxu0 %v918
    %v968 = vpop.f32.mrb[0].mxu0
    %v969 = vadd.f32 0.0, %v968
    %v970 = vpop.f32.mrb[0].mxu0
    %v971 = vpop.f32.mrb[0].mxu0
    %v972 = vadd.f32 0.0, %v971
    %v973 = vpop.f32.mrb[0].mxu0
    %974 = vmatprep.mubr.bf16.mxu0 0
    %975 = vmatmul.mubr.bf16.gmra.mrb[0].mxu0 %v919
    %v976 = vpop.f32.mrb[0].mxu0
    %v977 = vadd.f32 0.0, %v976
    %v978 = vpop.f32.mrb[0].mxu0
    %v979 = vpop.f32.mrb[0].mxu0
    %v980 = vadd.f32 0.0, %v979
    %v981 = vpop.f32.mrb[0].mxu0
    %982 = vmatprep.mubr.bf16.mxu0 0
    %983 = vmatmul.mubr.bf16.gmra.mrb[0].mxu0 %v920
    %v984 = vpop.f32.mrb[0].mxu0
    %v985 = vadd.f32 0.0, %v984
    %v986 = vpop.f32.mrb[0].mxu0
    %v987 = vpop.f32.mrb[0].mxu0
    %v988 = vadd.f32 0.0, %v987
    %v989 = vpop.f32.mrb[0].mxu0
    %990 = vmatprep.mubr.bf16.mxu0 0
    %991 = vmatmul.mubr.bf16.gmra.mrb[0].mxu0 %v921
    %v992 = vpop.f32.mrb[0].mxu0
    %v993 = vadd.f32 0.0, %v992
    %v994 = vpop.f32.mrb[0].mxu0
    %v995 = vpop.f32.mrb[0].mxu0
    %v996 = vadd.f32 0.0, %v995
    %v997 = vpop.f32.mrb[0].mxu0
    %998 = vmatprep.mubr.bf16.mxu0 0
    %999 = vmatmul.mubr.bf16.gmra.mrb[0].mxu0 %v922
    %v1000 = vpop.f32.mrb[0].mxu0
    %v1001 = vadd.f32 0.0, %v1000
    %v1002 = vpop.f32.mrb[0].mxu0
    %v1003 = vpop.f32.mrb[0].mxu0
    %v1004 = vadd.f32 0.0, %v1003
    %v1005 = vpop.f32.mrb[0].mxu0
    %1006 = vmatprep.mubr.bf16.mxu0 0
    %1007 = vmatmul.mubr.bf16.gmra.mrb[0].mxu0 %v923
    %v1008 = vpop.f32.mrb[0].mxu0
    %v1009 = vadd.f32 0.0, %v1008
    %v1010 = vpop.f32.mrb[0].mxu0
    %v1011 = vpop.f32.mrb[0].mxu0
    %v1012 = vadd.f32 0.0, %v1011
    %v1013 = vpop.f32.mrb[0].mxu0
    %1014 = vmatprep.mubr.bf16.mxu0 0
    %1015 = vmatmul.mubr.bf16.gmra.mrb[0].mxu0 %v924
    %v1016 = vpop.f32.mrb[0].mxu0
    %v1017 = vadd.f32 0.0, %v1016
    %v1018 = vpop.f32.mrb[0].mxu0
    %v1019 = vpop.f32.mrb[0].mxu0
    %v1020 = vadd.f32 0.0, %v1019
    %v1021 = vpop.f32.mrb[0].mxu0
    %1022 = vmatprep.mubr.bf16.mxu0 0
    %1023 = vmatmul.mubr.bf16.gmra.mrb[0].mxu0 %v925
    %v1024 = vpop.f32.mrb[0].mxu0
    %v1025 = vadd.f32 0.0, %v1024
    %v1026 = vpop.f32.mrb[0].mxu0
    %v1027 = vpop.f32.mrb[0].mxu0
    %v1028 = vadd.f32 0.0, %v1027
    %v1029 = vpop.f32.mrb[0].mxu0
    %1030 = vdwg.mxu0
    %v1031 = vpack.c.bf16 %v972, %v969
    %v1032 = vpack.c.bf16 %v980, %v977
    %v1033 = vpack.c.bf16 %v988, %v985
    %v1034 = vpack.c.bf16 %v996, %v993
    %v1035 = vpack.c.bf16 %v1004, %v1001
    %v1036 = vpack.c.bf16 %v1012, %v1009
    %v1037 = vpack.c.bf16 %v1020, %v1017
    %v1038 = vpack.c.bf16 %v1028, %v1025
    %s1039 = scalar_lea.vmem %s4, 64
    %v1040 = vld [vmem:[%s1039] sm:$0xf]
    %v1041 = vld [vmem:[%s1039 + $0x4] sm:$0xf]
    %v1042 = vld [vmem:[%s1039 + $0x8] sm:$0xf]
    %v1043 = vld [vmem:[%s1039 + $0xc] sm:$0xf]
    %v1044 = vld [vmem:[%s1039 + $0x10] sm:$0xf]
    %v1045 = vld [vmem:[%s1039 + $0x14] sm:$0xf]
    %v1046 = vld [vmem:[%s1039 + $0x18] sm:$0xf]
    %v1047 = vld [vmem:[%s1039 + $0x1c] sm:$0xf]
    %v1048 = vld [vmem:[%s1039 + $0x20] sm:$0xf]
    %v1049 = vld [vmem:[%s1039 + $0x24] sm:$0xf]
    %v1050 = vld [vmem:[%s1039 + $0x28] sm:$0xf]
    %v1051 = vld [vmem:[%s1039 + $0x2c] sm:$0xf]
    %v1052 = vld [vmem:[%s1039 + $0x30] sm:$0xf]
    %v1053 = vld [vmem:[%s1039 + $0x34] sm:$0xf]
    %v1054 = vld [vmem:[%s1039 + $0x38] sm:$0xf]
    %v1055 = vld [vmem:[%s1039 + $0x3c] sm:$0xf]
    %s1056 = scalar_lea.vmem %s5, 1
    %v1057 = vld [vmem:[%s1056] sm:$0x1]
    %v1059 = vlaneseq
    %v1060 = vshrl.u32 %v1059, 7
    %v1061 = vsub.s32 0, %v1060
    %v1062 = vrot.slane %v1057, %v1061
    %v1080 = vunpack.c.l.b16 %v1040
    %v1081 = vunpack.c.l.b16 %v1041
    %v1082 = vunpack.c.l.b16 %v1042
    %v1083 = vunpack.c.l.b16 %v1043
    %v1084 = vunpack.c.l.b16 %v1044
    %v1085 = vunpack.c.l.b16 %v1045
    %v1086 = vunpack.c.l.b16 %v1046
    %v1087 = vunpack.c.l.b16 %v1047
    %v1088 = vunpack.c.l.b16 %v1048
    %v1089 = vunpack.c.l.b16 %v1049
    %v1090 = vunpack.c.l.b16 %v1050
    %v1091 = vunpack.c.l.b16 %v1051
    %v1092 = vunpack.c.l.b16 %v1052
    %v1093 = vunpack.c.l.b16 %v1053
    %v1094 = vunpack.c.l.b16 %v1054
    %v1095 = vunpack.c.l.b16 %v1055
    %v1096 = vpack.c.b16 %v1081, %v1080
    %v1097 = vpack.c.b16 %v1083, %v1082
    %v1098 = vpack.c.b16 %v1085, %v1084
    %v1099 = vpack.c.b16 %v1087, %v1086
    %v1100 = vpack.c.b16 %v1089, %v1088
    %v1101 = vpack.c.b16 %v1091, %v1090
    %v1102 = vpack.c.b16 %v1093, %v1092
    %v1103 = vpack.c.b16 %v1095, %v1094
    %1112 = vmatprep.subr.bf16.mxu0 0
    %1113 = vmatpush1.bf16.msra.mxu0 %v1096
    %1114 = vmatprep.subr.bf16.mxu0 0
    %1115 = vmatpush1.bf16.msra.mxu0 %v1097
    %1116 = vmatprep.subr.bf16.mxu0 0
    %1117 = vmatpush1.bf16.msra.mxu0 %v1098
    %1118 = vmatprep.subr.bf16.mxu0 0
    %1119 = vmatpush1.bf16.msra.mxu0 %v1099
    %1120 = vmatprep.subr.bf16.mxu0 0
    %1121 = vmatpush1.bf16.msra.mxu0 %v1100
    %1122 = vmatprep.subr.bf16.mxu0 0
    %1123 = vmatpush1.bf16.msra.mxu0 %v1101
    %1124 = vmatprep.subr.bf16.mxu0 0
    %1125 = vmatpush1.bf16.msra.mxu0 %v1102
    %1126 = vmatprep.subr.bf16.mxu0 0
    %1127 = vmatpush1.bf16.msra.mxu0 %v1103
    %1128 = vmatprep.subr.bf16.mxu0 0
    %1129 = vmatpush1.bf16.msra.mxu0 0
    %1130 = vmatprep.subr.bf16.mxu0 0
    %1131 = vmatpush1.bf16.msra.mxu0 0
    %1132 = vmatprep.subr.bf16.mxu0 0
    %1133 = vmatpush1.bf16.msra.mxu0 0
    %1134 = vmatprep.subr.bf16.mxu0 0
    %1135 = vmatpush1.bf16.msra.mxu0 0
    %1136 = vmatprep.subr.bf16.mxu0 0
    %1137 = vmatpush1.bf16.msra.mxu0 0
    %1138 = vmatprep.subr.bf16.mxu0 0
    %1139 = vmatpush1.bf16.msra.mxu0 0
    %1140 = vmatprep.subr.bf16.mxu0 0
    %1141 = vmatpush1.bf16.msra.mxu0 0
    %1142 = vmatprep.subr.bf16.mxu0 0
    %1143 = vmatpush1.bf16.msra.mxu0 0
    %1144 = vmatprep.mubr.bf16.mxu0 0
    %1145 = vmatmul.mubr.bf16.gmra.mrb[0].mxu0 %v1031
    %v1146 = vpop.f32.mrb[0].mxu0
    %v1147 = vadd.f32 %v1062, %v1146
    %v1148 = vpop.f32.mrb[0].mxu0
    %v1149 = vpop.f32.mrb[0].mxu0
    %v1150 = vadd.f32 %v1062, %v1149
    %v1151 = vpop.f32.mrb[0].mxu0
    %1152 = vmatprep.mubr.bf16.mxu0 0
    %1153 = vmatmul.mubr.bf16.gmra.mrb[0].mxu0 %v1032
    %v1154 = vpop.f32.mrb[0].mxu0
    %v1155 = vadd.f32 %v1062, %v1154
    %v1156 = vpop.f32.mrb[0].mxu0
    %v1157 = vpop.f32.mrb[0].mxu0
    %v1158 = vadd.f32 %v1062, %v1157
    %v1159 = vpop.f32.mrb[0].mxu0
    %1160 = vmatprep.mubr.bf16.mxu0 0
    %1161 = vmatmul.mubr.bf16.gmra.mrb[0].mxu0 %v1033
    %v1162 = vpop.f32.mrb[0].mxu0
    %v1163 = vadd.f32 %v1062, %v1162
    %v1164 = vpop.f32.mrb[0].mxu0
    %v1165 = vpop.f32.mrb[0].mxu0
    %v1166 = vadd.f32 %v1062, %v1165
    %v1167 = vpop.f32.mrb[0].mxu0
    %1168 = vmatprep.mubr.bf16.mxu0 0
    %1169 = vmatmul.mubr.bf16.gmra.mrb[0].mxu0 %v1034
    %v1170 = vpop.f32.mrb[0].mxu0
    %v1171 = vadd.f32 %v1062, %v1170
    %v1172 = vpop.f32.mrb[0].mxu0
    %v1173 = vpop.f32.mrb[0].mxu0
    %v1174 = vadd.f32 %v1062, %v1173
    %v1175 = vpop.f32.mrb[0].mxu0
    %1176 = vmatprep.mubr.bf16.mxu0 0
    %1177 = vmatmul.mubr.bf16.gmra.mrb[0].mxu0 %v1035
    %v1178 = vpop.f32.mrb[0].mxu0
    %v1179 = vadd.f32 %v1062, %v1178
    %v1180 = vpop.f32.mrb[0].mxu0
    %v1181 = vpop.f32.mrb[0].mxu0
    %v1182 = vadd.f32 %v1062, %v1181
    %v1183 = vpop.f32.mrb[0].mxu0
    %1184 = vmatprep.mubr.bf16.mxu0 0
    %1185 = vmatmul.mubr.bf16.gmra.mrb[0].mxu0 %v1036
    %v1186 = vpop.f32.mrb[0].mxu0
    %v1187 = vadd.f32 %v1062, %v1186
    %v1188 = vpop.f32.mrb[0].mxu0
    %v1189 = vpop.f32.mrb[0].mxu0
    %v1190 = vadd.f32 %v1062, %v1189
    %v1191 = vpop.f32.mrb[0].mxu0
    %1192 = vmatprep.mubr.bf16.mxu0 0
    %1193 = vmatmul.mubr.bf16.gmra.mrb[0].mxu0 %v1037
    %v1194 = vpop.f32.mrb[0].mxu0
    %v1195 = vadd.f32 %v1062, %v1194
    %v1196 = vpop.f32.mrb[0].mxu0
    %v1197 = vpop.f32.mrb[0].mxu0
    %v1198 = vadd.f32 %v1062, %v1197
    %v1199 = vpop.f32.mrb[0].mxu0
    %1200 = vmatprep.mubr.bf16.mxu0 0
    %1201 = vmatmul.mubr.bf16.gmra.mrb[0].mxu0 %v1038
    %v1202 = vpop.f32.mrb[0].mxu0
    %v1203 = vadd.f32 %v1062, %v1202
    %v1204 = vpop.f32.mrb[0].mxu0
    %v1205 = vpop.f32.mrb[0].mxu0
    %v1206 = vadd.f32 %v1062, %v1205
    %v1207 = vpop.f32.mrb[0].mxu0
    %1208 = vdwg.mxu0
    %v1209 = vmax.f32 %v1147, 0.0
    %v1210 = vmax.f32 %v1150, 0.0
    %v1211 = vmax.f32 %v1155, 0.0
    %v1212 = vmax.f32 %v1158, 0.0
    %v1213 = vmax.f32 %v1163, 0.0
    %v1214 = vmax.f32 %v1166, 0.0
    %v1215 = vmax.f32 %v1171, 0.0
    %v1216 = vmax.f32 %v1174, 0.0
    %v1217 = vmax.f32 %v1179, 0.0
    %v1218 = vmax.f32 %v1182, 0.0
    %v1219 = vmax.f32 %v1187, 0.0
    %v1220 = vmax.f32 %v1190, 0.0
    %v1221 = vmax.f32 %v1195, 0.0
    %v1222 = vmax.f32 %v1198, 0.0
    %v1223 = vmax.f32 %v1203, 0.0
    %v1224 = vmax.f32 %v1206, 0.0
    %v1225 = vpack.c.bf16 %v1210, %v1209
    %v1226 = vpack.c.bf16 %v1212, %v1211
    %v1227 = vpack.c.bf16 %v1214, %v1213
    %v1228 = vpack.c.bf16 %v1216, %v1215
    %v1229 = vpack.c.bf16 %v1218, %v1217
    %v1230 = vpack.c.bf16 %v1220, %v1219
    %v1231 = vpack.c.bf16 %v1222, %v1221
    %v1232 = vpack.c.bf16 %v1224, %v1223
    %s1233 = scalar_lea.vmem %s6, 64
    %v1234 = vld [vmem:[%s1233] sm:$0xf]
    %v1235 = vld [vmem:[%s1233 + $0x4] sm:$0xf]
    %v1236 = vld [vmem:[%s1233 + $0x8] sm:$0xf]
    %v1237 = vld [vmem:[%s1233 + $0xc] sm:$0xf]
    %v1238 = vld [vmem:[%s1233 + $0x10] sm:$0xf]
    %v1239 = vld [vmem:[%s1233 + $0x14] sm:$0xf]
    %v1240 = vld [vmem:[%s1233 + $0x18] sm:$0xf]
    %v1241 = vld [vmem:[%s1233 + $0x1c] sm:$0xf]
    %v1242 = vld [vmem:[%s1233 + $0x20] sm:$0xf]
    %v1243 = vld [vmem:[%s1233 + $0x24] sm:$0xf]
    %v1244 = vld [vmem:[%s1233 + $0x28] sm:$0xf]
    %v1245 = vld [vmem:[%s1233 + $0x2c] sm:$0xf]
    %v1246 = vld [vmem:[%s1233 + $0x30] sm:$0xf]
    %v1247 = vld [vmem:[%s1233 + $0x34] sm:$0xf]
    %v1248 = vld [vmem:[%s1233 + $0x38] sm:$0xf]
    %v1249 = vld [vmem:[%s1233 + $0x3c] sm:$0xf]
    %s1250 = scalar_lea.vmem %s7, 1
    %v1251 = vld [vmem:[%s1250] sm:$0x1]
    %v1253 = vlaneseq
    %v1254 = vshrl.u32 %v1253, 7
    %v1255 = vsub.s32 0, %v1254
    %v1256 = vrot.slane %v1251, %v1255
    %v1274 = vunpack.c.l.b16 %v1234
    %v1275 = vunpack.c.l.b16 %v1235
    %v1276 = vunpack.c.l.b16 %v1236
    %v1277 = vunpack.c.l.b16 %v1237
    %v1278 = vunpack.c.l.b16 %v1238
    %v1279 = vunpack.c.l.b16 %v1239
    %v1280 = vunpack.c.l.b16 %v1240
    %v1281 = vunpack.c.l.b16 %v1241
    %v1282 = vunpack.c.l.b16 %v1242
    %v1283 = vunpack.c.l.b16 %v1243
    %v1284 = vunpack.c.l.b16 %v1244
    %v1285 = vunpack.c.l.b16 %v1245
    %v1286 = vunpack.c.l.b16 %v1246
    %v1287 = vunpack.c.l.b16 %v1247
    %v1288 = vunpack.c.l.b16 %v1248
    %v1289 = vunpack.c.l.b16 %v1249
    %v1290 = vpack.c.b16 %v1275, %v1274
    %v1291 = vpack.c.b16 %v1277, %v1276
    %v1292 = vpack.c.b16 %v1279, %v1278
    %v1293 = vpack.c.b16 %v1281, %v1280
    %v1294 = vpack.c.b16 %v1283, %v1282
    %v1295 = vpack.c.b16 %v1285, %v1284
    %v1296 = vpack.c.b16 %v1287, %v1286
    %v1297 = vpack.c.b16 %v1289, %v1288
    %1306 = vmatprep.subr.bf16.mxu0 0
    %1307 = vmatpush1.bf16.msra.mxu0 %v1290
    %1308 = vmatprep.subr.bf16.mxu0 0
    %1309 = vmatpush1.bf16.msra.mxu0 %v1291
    %1310 = vmatprep.subr.bf16.mxu0 0
    %1311 = vmatpush1.bf16.msra.mxu0 %v1292
    %1312 = vmatprep.subr.bf16.mxu0 0
    %1313 = vmatpush1.bf16.msra.mxu0 %v1293
    %1314 = vmatprep.subr.bf16.mxu0 0
    %1315 = vmatpush1.bf16.msra.mxu0 %v1294
    %1316 = vmatprep.subr.bf16.mxu0 0
    %1317 = vmatpush1.bf16.msra.mxu0 %v1295
    %1318 = vmatprep.subr.bf16.mxu0 0
    %1319 = vmatpush1.bf16.msra.mxu0 %v1296
    %1320 = vmatprep.subr.bf16.mxu0 0
    %1321 = vmatpush1.bf16.msra.mxu0 %v1297
    %1322 = vmatprep.subr.bf16.mxu0 0
    %1323 = vmatpush1.bf16.msra.mxu0 0
    %1324 = vmatprep.subr.bf16.mxu0 0
    %1325 = vmatpush1.bf16.msra.mxu0 0
    %1326 = vmatprep.subr.bf16.mxu0 0
    %1327 = vmatpush1.bf16.msra.mxu0 0
    %1328 = vmatprep.subr.bf16.mxu0 0
    %1329 = vmatpush1.bf16.msra.mxu0 0
    %1330 = vmatprep.subr.bf16.mxu0 0
    %1331 = vmatpush1.bf16.msra.mxu0 0
    %1332 = vmatprep.subr.bf16.mxu0 0
    %1333 = vmatpush1.bf16.msra.mxu0 0
    %1334 = vmatprep.subr.bf16.mxu0 0
    %1335 = vmatpush1.bf16.msra.mxu0 0
    %1336 = vmatprep.subr.bf16.mxu0 0
    %1337 = vmatpush1.bf16.msra.mxu0 0
    %1338 = vmatprep.mubr.bf16.mxu0 0
    %1339 = vmatmul.mubr.bf16.gmra.mrb[0].mxu0 %v1225
    %v1340 = vpop.f32.mrb[0].mxu0
    %v1341 = vadd.f32 %v1256, %v1340
    %v1342 = vpop.f32.mrb[0].mxu0
    %v1343 = vpop.f32.mrb[0].mxu0
    %v1344 = vadd.f32 %v1256, %v1343
    %v1345 = vpop.f32.mrb[0].mxu0
    %1346 = vmatprep.mubr.bf16.mxu0 0
    %1347 = vmatmul.mubr.bf16.gmra.mrb[0].mxu0 %v1226
    %v1348 = vpop.f32.mrb[0].mxu0
    %v1349 = vadd.f32 %v1256, %v1348
    %v1350 = vpop.f32.mrb[0].mxu0
    %v1351 = vpop.f32.mrb[0].mxu0
    %v1352 = vadd.f32 %v1256, %v1351
    %v1353 = vpop.f32.mrb[0].mxu0
    %1354 = vmatprep.mubr.bf16.mxu0 0
    %1355 = vmatmul.mubr.bf16.gmra.mrb[0].mxu0 %v1227
    %v1356 = vpop.f32.mrb[0].mxu0
    %v1357 = vadd.f32 %v1256, %v1356
    %v1358 = vpop.f32.mrb[0].mxu0
    %v1359 = vpop.f32.mrb[0].mxu0
    %v1360 = vadd.f32 %v1256, %v1359
    %v1361 = vpop.f32.mrb[0].mxu0
    %1362 = vmatprep.mubr.bf16.mxu0 0
    %1363 = vmatmul.mubr.bf16.gmra.mrb[0].mxu0 %v1228
    %v1364 = vpop.f32.mrb[0].mxu0
    %v1365 = vadd.f32 %v1256, %v1364
    %v1366 = vpop.f32.mrb[0].mxu0
    %v1367 = vpop.f32.mrb[0].mxu0
    %v1368 = vadd.f32 %v1256, %v1367
    %v1369 = vpop.f32.mrb[0].mxu0
    %1370 = vmatprep.mubr.bf16.mxu0 0
    %1371 = vmatmul.mubr.bf16.gmra.mrb[0].mxu0 %v1229
    %v1372 = vpop.f32.mrb[0].mxu0
    %v1373 = vadd.f32 %v1256, %v1372
    %v1374 = vpop.f32.mrb[0].mxu0
    %v1375 = vpop.f32.mrb[0].mxu0
    %v1376 = vadd.f32 %v1256, %v1375
    %v1377 = vpop.f32.mrb[0].mxu0
    %1378 = vmatprep.mubr.bf16.mxu0 0
    %1379 = vmatmul.mubr.bf16.gmra.mrb[0].mxu0 %v1230
    %v1380 = vpop.f32.mrb[0].mxu0
    %v1381 = vadd.f32 %v1256, %v1380
    %v1382 = vpop.f32.mrb[0].mxu0
    %v1383 = vpop.f32.mrb[0].mxu0
    %v1384 = vadd.f32 %v1256, %v1383
    %v1385 = vpop.f32.mrb[0].mxu0
    %1386 = vmatprep.mubr.bf16.mxu0 0
    %1387 = vmatmul.mubr.bf16.gmra.mrb[0].mxu0 %v1231
    %v1388 = vpop.f32.mrb[0].mxu0
    %v1389 = vadd.f32 %v1256, %v1388
    %v1390 = vpop.f32.mrb[0].mxu0
    %v1391 = vpop.f32.mrb[0].mxu0
    %v1392 = vadd.f32 %v1256, %v1391
    %v1393 = vpop.f32.mrb[0].mxu0
    %1394 = vmatprep.mubr.bf16.mxu0 0
    %1395 = vmatmul.mubr.bf16.gmra.mrb[0].mxu0 %v1232
    %v1396 = vpop.f32.mrb[0].mxu0
    %v1397 = vadd.f32 %v1256, %v1396
    %v1398 = vpop.f32.mrb[0].mxu0
    %v1399 = vpop.f32.mrb[0].mxu0
    %v1400 = vadd.f32 %v1256, %v1399
    %v1401 = vpop.f32.mrb[0].mxu0
    %1402 = vdwg.mxu0
    %v1403 = vmax.f32 %v1341, 0.0
    %v1404 = vmax.f32 %v1344, 0.0
    %v1405 = vmax.f32 %v1349, 0.0
    %v1406 = vmax.f32 %v1352, 0.0
    %v1407 = vmax.f32 %v1357, 0.0
    %v1408 = vmax.f32 %v1360, 0.0
    %v1409 = vmax.f32 %v1365, 0.0
    %v1410 = vmax.f32 %v1368, 0.0
    %v1411 = vmax.f32 %v1373, 0.0
    %v1412 = vmax.f32 %v1376, 0.0
    %v1413 = vmax.f32 %v1381, 0.0
    %v1414 = vmax.f32 %v1384, 0.0
    %v1415 = vmax.f32 %v1389, 0.0
    %v1416 = vmax.f32 %v1392, 0.0
    %v1417 = vmax.f32 %v1397, 0.0
    %v1418 = vmax.f32 %v1400, 0.0
    %s1419 = scalar_lea.vmem %s8, 1
    %v1420 = vld [vmem:[%s1419] sm:$0x1]
    %v1422 = vlaneseq
    %v1423 = vshrl.u32 %v1422, 7
    %v1424 = vsub.s32 0, %v1423
    %v1425 = vrot.slane %v1420, %v1424
    %v1427 = vmul.f32 %v1403, %v1425
    %v1428 = vmul.f32 %v1404, %v1425
    %v1429 = vmul.f32 %v1405, %v1425
    %v1430 = vmul.f32 %v1406, %v1425
    %v1431 = vmul.f32 %v1407, %v1425
    %v1432 = vmul.f32 %v1408, %v1425
    %v1433 = vmul.f32 %v1409, %v1425
    %v1434 = vmul.f32 %v1410, %v1425
    %v1435 = vmul.f32 %v1411, %v1425
    %v1436 = vmul.f32 %v1412, %v1425
    %v1437 = vmul.f32 %v1413, %v1425
    %v1438 = vmul.f32 %v1414, %v1425
    %v1439 = vmul.f32 %v1415, %v1425
    %v1440 = vmul.f32 %v1416, %v1425
    %v1441 = vmul.f32 %v1417, %v1425
    %v1442 = vmul.f32 %v1418, %v1425
    %s1443 = scalar_lea.vmem %s9, 1
    %v1444 = vld [vmem:[%s1443] sm:$0x1]
    %v1446 = vlaneseq
    %v1447 = vshrl.u32 %v1446, 7
    %v1448 = vsub.s32 0, %v1447
    %v1449 = vrot.slane %v1444, %v1448
    %v1451 = vadd.f32 %v1427, %v1449
    %v1452 = vadd.f32 %v1428, %v1449
    %v1453 = vadd.f32 %v1429, %v1449
    %v1454 = vadd.f32 %v1430, %v1449
    %v1455 = vadd.f32 %v1431, %v1449
    %v1456 = vadd.f32 %v1432, %v1449
    %v1457 = vadd.f32 %v1433, %v1449
    %v1458 = vadd.f32 %v1434, %v1449
    %v1459 = vadd.f32 %v1435, %v1449
    %v1460 = vadd.f32 %v1436, %v1449
    %v1461 = vadd.f32 %v1437, %v1449
    %v1462 = vadd.f32 %v1438, %v1449
    %v1463 = vadd.f32 %v1439, %v1449
    %v1464 = vadd.f32 %v1440, %v1449
    %v1465 = vadd.f32 %v1441, %v1449
    %v1466 = vadd.f32 %v1442, %v1449
    %v1467 = vmax.f32 %v1451, 0.0
    %v1468 = vmax.f32 %v1452, 0.0
    %v1469 = vmax.f32 %v1453, 0.0
    %v1470 = vmax.f32 %v1454, 0.0
    %v1471 = vmax.f32 %v1455, 0.0
    %v1472 = vmax.f32 %v1456, 0.0
    %v1473 = vmax.f32 %v1457, 0.0
    %v1474 = vmax.f32 %v1458, 0.0
    %v1475 = vmax.f32 %v1459, 0.0
    %v1476 = vmax.f32 %v1460, 0.0
    %v1477 = vmax.f32 %v1461, 0.0
    %v1478 = vmax.f32 %v1462, 0.0
    %v1479 = vmax.f32 %v1463, 0.0
    %v1480 = vmax.f32 %v1464, 0.0
    %v1481 = vmax.f32 %v1465, 0.0
    %v1482 = vmax.f32 %v1466, 0.0
    %v1483 = vadd.f32 %v845, %v1467
    %v1484 = vadd.f32 %v846, %v1468
    %v1485 = vadd.f32 %v847, %v1469
    %v1486 = vadd.f32 %v848, %v1470
    %v1487 = vadd.f32 %v849, %v1471
    %v1488 = vadd.f32 %v850, %v1472
    %v1489 = vadd.f32 %v851, %v1473
    %v1490 = vadd.f32 %v852, %v1474
    %v1491 = vadd.f32 %v853, %v1475
    %v1492 = vadd.f32 %v854, %v1476
    %v1493 = vadd.f32 %v855, %v1477
    %v1494 = vadd.f32 %v856, %v1478
    %v1495 = vadd.f32 %v857, %v1479
    %v1496 = vadd.f32 %v858, %v1480
    %v1497 = vadd.f32 %v859, %v1481
    %v1498 = vadd.f32 %v860, %v1482
    %1499 = vst [vmem:[#allocation2] sm:$0xff] %v1483
    %1500 = vst [vmem:[#allocation2 + $0x8] sm:$0xff] %v1484
    %1501 = vst [vmem:[#allocation2 + $0x10] sm:$0xff] %v1485
    %1502 = vst [vmem:[#allocation2 + $0x18] sm:$0xff] %v1486
    %1503 = vst [vmem:[#allocation2 + $0x20] sm:$0xff] %v1487
    %1504 = vst [vmem:[#allocation2 + $0x28] sm:$0xff] %v1488
    %1505 = vst [vmem:[#allocation2 + $0x30] sm:$0xff] %v1489
    %1506 = vst [vmem:[#allocation2 + $0x38] sm:$0xff] %v1490
    %1507 = vst [vmem:[#allocation2 + $0x40] sm:$0xff] %v1491
    %1508 = vst [vmem:[#allocation2 + $0x48] sm:$0xff] %v1492
    %1509 = vst [vmem:[#allocation2 + $0x50] sm:$0xff] %v1493
    %1510 = vst [vmem:[#allocation2 + $0x58] sm:$0xff] %v1494
    %1511 = vst [vmem:[#allocation2 + $0x60] sm:$0xff] %v1495
    %1512 = vst [vmem:[#allocation2 + $0x68] sm:$0xff] %v1496
    %1513 = vst [vmem:[#allocation2 + $0x70] sm:$0xff] %v1497
    %1514 = vst [vmem:[#allocation2 + $0x78] sm:$0xff] %v1498
    // Predicated region
    $region42: #{gin_net_forward.1} parent=1 // pred_check
      _
    $region43: #{gin_net_forward.1} parent=1 // pred_check_branch
      %1516 = sbr.rel (0) target = $region45
    $region44: #{gin_net_forward.1} parent=1 // pred_region
      %s1518 = ssub.s32 2048, 2048
      %1519 = vsyncadd [#allocation3], %s1518
      %s1520 = sshll.u32 [#allocation2], 4
      %s1521 = int_to_ptr.vmem [resolvable:$true] %s1520
      %1526 = dma.vmem_to_hbm [thread:$0]  %s1521, 2048, %s10, [#allocation3], 128, 128, 8
    $region45: #{gin_net_forward.1} parent=1 // pred_fallthru
      _
    // Predicated region
    $region46: #{gin_net_forward.1} parent=1 // pred_check
      _
    $region47: #{gin_net_forward.1} parent=1 // pred_check_branch
      %1528 = sbr.rel (0) target = $region49
    $region48: #{gin_net_forward.1} parent=1 // pred_region
      %1529 = dma.done [#allocation3], 2048
    $region49: #{gin_net_forward.1} parent=1 // pred_fallthru
      _
    %1530 = vsyncpa [#allocation3], 1

</llo_original>
